<compile_context>
chip_gen: v7x
topology: tpu7x:2x2x1
jax: 0.10.0
libtpu: 0.0.40
codegen_flags: <defaults>
</compile_context>

<pallas_src>
import jax
import jax.numpy as jnp
from jax import lax
from jax.experimental import pallas as pl
from jax.experimental.pallas import tpu as pltpu


# ---------------------------------------------------------------------------
# Kernel 1: tiled energy accumulation + row softmax (attention matrices).
#   grid = (num_tiles over N//2,)  -- reduction axis ("arbitrary")
# ---------------------------------------------------------------------------
def _energy_kernel(xmh_ref, xfh_ref, xlh_ref,
                   wk_ref, wq1_ref, wq2_ref,
                   bk_ref, bq1_ref, bq2_ref,
                   af_ref, al_ref,
                   ef_acc, el_acc):
    t = pl.program_id(0)

    @pl.when(t == 0)
    def _():
        ef_acc[...] = jnp.zeros_like(ef_acc)
        el_acc[...] = jnp.zeros_like(el_acc)

    # Key / query projections for this spatial tile (bf16 MXU, f32 accumulate).
    k_t = jnp.dot(wk_ref[...], xmh_ref[...],
                  preferred_element_type=jnp.float32) + bk_ref[...]
    qf_t = jnp.dot(wq1_ref[...], xfh_ref[...],
                   preferred_element_type=jnp.float32) + bq1_ref[...]
    ql_t = jnp.dot(wq2_ref[...], xlh_ref[...],
                   preferred_element_type=jnp.float32) + bq2_ref[...]

    # Partial energies: contract this tile's spatial axis (axis 1 of both),
    # i.e. K @ Q^T without an explicit transpose.
    dn = (((1,), (1,)), ((), ()))
    ef_acc[...] += lax.dot_general(k_t, qf_t, dn,
                                   preferred_element_type=jnp.float32)
    el_acc[...] += lax.dot_general(k_t, ql_t, dn,
                                   preferred_element_type=jnp.float32)

    @pl.when(t == pl.num_programs(0) - 1)
    def _():
        def _softmax(e):
            e = e - jnp.max(e, axis=-1, keepdims=True)
            p = jnp.exp(e)
            return p * pl.reciprocal(jnp.sum(p, axis=-1, keepdims=True),
                                     approx=True)

        af_ref[...] = _softmax(ef_acc[...])
        al_ref[...] = _softmax(el_acc[...])


# ---------------------------------------------------------------------------
# Kernel 2: per-tile value projections + attention matmul + residual.
#   grid = (num_tiles over N,)  -- independent tiles ("parallel")
#   gamma has already been folded into wv*/bv* by the wrapper.
# ---------------------------------------------------------------------------
def _pv_kernel(af_ref, al_ref,
               wv1_ref, wv2_ref, bv1_ref, bv2_ref,
               xf_ref, xl_ref, xm_ref,
               out_ref):
    vf = jnp.dot(wv1_ref[...], xf_ref[...],
                 preferred_element_type=jnp.float32) + bv1_ref[...]
    vl = jnp.dot(wv2_ref[...], xl_ref[...],
                 preferred_element_type=jnp.float32) + bv2_ref[...]
    out = (jnp.dot(af_ref[...], vf, preferred_element_type=jnp.float32)
           + jnp.dot(al_ref[...], vl, preferred_element_type=jnp.float32))
    out_ref[...] = out + xm_ref[...]


def _pick_tile(total, target, align=128):
    """Largest multiple of `align` that divides `total` and is <= target; else full."""
    if total % align != 0:
        return total
    t = (min(target, total) // align) * align
    while t >= align and total % t != 0:
        t -= align
    return t if t >= align else total


def coatten_forward(params, x_f, x_m, x_l, energy_tile=512, pv_tile=1024):
    B, C, H, W = x_f.shape
    assert B == 1, "module's squeeze(0)/mm semantics require batch == 1"
    N = H * W
    assert N % 2 == 0, "the (C//2, N) -> (C, N//2) view requires even H*W"
    Nh = N // 2
    Ch = C // 2
    f32, bf16 = jnp.float32, jnp.bfloat16

    # ---- one-off (tiny) parameter preprocessing ---------------------------
    # Fold the (C//2, N) -> (C, N//2) relayout into the weights: kron(W, I2)
    # acting on x viewed as (2C, N//2) produces key/query in (C, N//2) layout.
    eye2 = jnp.eye(2, dtype=f32)
    wk_exp = jnp.kron(params["wk"], eye2).astype(bf16)     # (C, 2C)
    wq1_exp = jnp.kron(params["wq1"], eye2).astype(bf16)   # (C, 2C)
    wq2_exp = jnp.kron(params["wq2"], eye2).astype(bf16)   # (C, 2C)
    bk2 = jnp.repeat(params["bk"].reshape(Ch, 1), 2, axis=0).astype(f32)
    bq12 = jnp.repeat(params["bq1"].reshape(Ch, 1), 2, axis=0).astype(f32)
    bq22 = jnp.repeat(params["bq2"].reshape(Ch, 1), 2, axis=0).astype(f32)
    # Fold gamma into the value path:  gamma*(A@(Wv x + bv)) == A@((g Wv)x + g bv)
    gamma = params["gamma"].reshape(()).astype(f32)
    wv1g = (gamma * params["wv1"]).astype(bf16)             # (C, C)
    wv2g = (gamma * params["wv2"]).astype(bf16)
    bv1g = (gamma * params["bv1"]).reshape(C, 1).astype(f32)
    bv2g = (gamma * params["bv2"]).reshape(C, 1).astype(f32)

    # ---- activations: bf16 copies feed the MXU, f32 x_m feeds the residual.
    xf_bf = x_f.reshape(C, N).astype(bf16)
    xl_bf = x_l.reshape(C, N).astype(bf16)
    xm_bf = x_m.reshape(C, N).astype(bf16)
    xm_f32 = x_m.reshape(C, N).astype(f32)
    # Free row-major views (C, N) -> (2C, N//2): rows 2c / 2c+1 are the first /
    # second spatial half of channel c.
    xfh = xf_bf.reshape(2 * C, Nh)
    xlh = xl_bf.reshape(2 * C, Nh)
    xmh = xm_bf.reshape(2 * C, Nh)

    tn_e = _pick_tile(Nh, energy_tile)
    tn_p = _pick_tile(N, pv_tile)

    resident = lambda t: (0, 0)
    spatial = lambda t: (0, t)

    # ---------------- call 1: energies -> softmax attention matrices -------
    af, al = pl.pallas_call(
        _energy_kernel,
        grid=(Nh // tn_e,),
        in_specs=[
            pl.BlockSpec((2 * C, tn_e), spatial),   # x_m half-layout (key)
            pl.BlockSpec((2 * C, tn_e), spatial),   # x_f half-layout (query_f)
            pl.BlockSpec((2 * C, tn_e), spatial),   # x_l half-layout (query_l)
            pl.BlockSpec((C, 2 * C), resident),     # wk_exp
            pl.BlockSpec((C, 2 * C), resident),     # wq1_exp
            pl.BlockSpec((C, 2 * C), resident),     # wq2_exp
            pl.BlockSpec((C, 1), resident),         # bk2
            pl.BlockSpec((C, 1), resident),         # bq12
            pl.BlockSpec((C, 1), resident),         # bq22
        ],
        out_specs=[pl.BlockSpec((C, C), resident),
                   pl.BlockSpec((C, C), resident)],
        out_shape=(jax.ShapeDtypeStruct((C, C), f32),
                   jax.ShapeDtypeStruct((C, C), f32)),
        scratch_shapes=[pltpu.VMEM((C, C), f32),
                        pltpu.VMEM((C, C), f32)],
        compiler_params=pltpu.CompilerParams(
            dimension_semantics=("arbitrary",),
            vmem_limit_bytes=32 * 1024 * 1024),
    )(xmh, xfh, xlh, wk_exp, wq1_exp, wq2_exp, bk2, bq12, bq22)

    # ---------------- call 2: tiled value proj + attention + residual ------
    out2 = pl.pallas_call(
        _pv_kernel,
        grid=(N // tn_p,),
        in_specs=[
            pl.BlockSpec((C, C), resident),         # attention_f
            pl.BlockSpec((C, C), resident),         # attention_l
            pl.BlockSpec((C, C), resident),         # gamma * wv1
            pl.BlockSpec((C, C), resident),         # gamma * wv2
            pl.BlockSpec((C, 1), resident),         # gamma * bv1
            pl.BlockSpec((C, 1), resident),         # gamma * bv2
            pl.BlockSpec((C, tn_p), spatial),       # x_f tile (value_f)
            pl.BlockSpec((C, tn_p), spatial),       # x_l tile (value_l)
            pl.BlockSpec((C, tn_p), spatial),       # x_m tile (residual, f32)
        ],
        out_specs=pl.BlockSpec((C, tn_p), spatial),
        out_shape=jax.ShapeDtypeStruct((C, N), f32),
        compiler_params=pltpu.CompilerParams(
            dimension_semantics=("parallel",),
            vmem_limit_bytes=32 * 1024 * 1024),
    )(af, al, wv1g, wv2g, bv1g, bv2g, xf_bf, xl_bf, xm_f32)

    return out2.reshape(x_m.shape)


def coatten_reference(params, x_f, x_m, x_l, matmul_dtype=jnp.float32):
    """Direct transcription of the PyTorch forward (optionally bf16 matmul
    operands to mirror the kernel's precision choices)."""
    B, C, H, W = x_f.shape
    N = H * W
    md = matmul_dtype

    def conv1x1(w, b, x):  # 1x1 conv == channel matmul
        return (jnp.dot(w.astype(md), x.reshape(C, N).astype(md),
                        preferred_element_type=jnp.float32)
                + b.reshape(-1, 1))

    qf = conv1x1(params["wq1"], params["bq1"], x_f).reshape(C, N // 2)
    ql = conv1x1(params["wq2"], params["bq2"], x_l).reshape(C, N // 2)
    k = conv1x1(params["wk"], params["bk"], x_m).reshape(C, N // 2)
    af = jax.nn.softmax(k @ qf.T, axis=-1)
    al = jax.nn.softmax(k @ ql.T, axis=-1)
    vf = conv1x1(params["wv1"], params["bv1"], x_f)
    vl = conv1x1(params["wv2"], params["bv2"], x_l)
    out = (af @ vf + al @ vl).reshape(x_m.shape)
    return params["gamma"].reshape(()) * out + x_m


if __name__ == "__main__":
    C, H, W = 8, 64, 64        # in_dim=8, spatial 64x64 -> N=4096, N//2=2048
    Ch = C // 2

    key = jax.random.PRNGKey(0)
    keys = jax.random.split(key, 14)
    rnd = lambda k, s, scale=0.1: (scale * jax.random.normal(k, s)).astype(jnp.float32)

    params = {
        "wq1": rnd(keys[0], (Ch, C)), "bq1": rnd(keys[1], (Ch,)),
        "wq2": rnd(keys[2], (Ch, C)), "bq2": rnd(keys[3], (Ch,)),
        "wk":  rnd(keys[4], (Ch, C)), "bk":  rnd(keys[5], (Ch,)),
        "wv1": rnd(keys[6], (C, C)),  "bv1": rnd(keys[7], (C,)),
        "wv2": rnd(keys[8], (C, C)),  "bv2": rnd(keys[9], (C,)),
        # nn.Parameter(torch.zeros(1)) in __init__; nonzero here so the
        # attention path is actually exercised by the check.
        "gamma": jnp.full((1,), 0.5, jnp.float32),
    }

    x_f = jax.random.normal(keys[10], (1, C, H, W), jnp.float32)
    x_m = jax.random.normal(keys[11], (1, C, H, W), jnp.float32)
    x_l = jax.random.normal(keys[12], (1, C, H, W), jnp.float32)

    coatten = jax.jit(coatten_forward)
    out = jax.block_until_ready(coatten(params, x_f, x_m, x_l))
    assert out.shape == x_m.shape

    # Reference mirrors the kernel's precision (bf16 matmul operands, f32 acc).
    ref = coatten_reference(params, x_f, x_m, x_l, matmul_dtype=jnp.bfloat16)
    max_diff = float(jnp.max(jnp.abs(out - ref)))
    assert jnp.allclose(out, ref, atol=1e-2, rtol=1e-2), (
        f"Pallas output mismatch vs reference: max abs diff = {max_diff}")
    print("KERNEL_OK")
</pallas_src>

<mosaic_0001>
module attributes {stable_mosaic.version = 11 : i64} {
  func.func @_energy_kernel(%arg0: i32, %arg1: memref<16x512xbf16, #tpu.memory_space<vmem>>, %arg2: memref<16x512xbf16, #tpu.memory_space<vmem>>, %arg3: memref<16x512xbf16, #tpu.memory_space<vmem>>, %arg4: memref<8x16xbf16, #tpu.memory_space<vmem>>, %arg5: memref<8x16xbf16, #tpu.memory_space<vmem>>, %arg6: memref<8x16xbf16, #tpu.memory_space<vmem>>, %arg7: memref<8x1xf32, #tpu.memory_space<vmem>>, %arg8: memref<8x1xf32, #tpu.memory_space<vmem>>, %arg9: memref<8x1xf32, #tpu.memory_space<vmem>>, %arg10: memref<8x8xf32, #tpu.memory_space<vmem>>, %arg11: memref<8x8xf32, #tpu.memory_space<vmem>>, %arg12: memref<8x8xf32, #tpu.memory_space<vmem>>, %arg13: memref<8x8xf32, #tpu.memory_space<vmem>>) attributes {dimension_semantics = [#tpu.dimension_semantics<arbitrary>], iteration_bounds = array<i64: 4>, scalar_prefetch = 0 : i64, scratch_operands = 2 : i64, tpu.core_type = #tpu.core_type<tc>, window_params = [{transform_indices = @transform_0, window_bounds = array<i64: 16, 512>}, {transform_indices = @transform_1, window_bounds = array<i64: 16, 512>}, {transform_indices = @transform_2, window_bounds = array<i64: 16, 512>}, {pipeline_mode = #tpu.pipeline_mode<synchronous>, transform_indices = @transform_3, window_bounds = array<i64: 8, 16>}, {pipeline_mode = #tpu.pipeline_mode<synchronous>, transform_indices = @transform_4, window_bounds = array<i64: 8, 16>}, {pipeline_mode = #tpu.pipeline_mode<synchronous>, transform_indices = @transform_5, window_bounds = array<i64: 8, 16>}, {pipeline_mode = #tpu.pipeline_mode<synchronous>, transform_indices = @transform_6, window_bounds = array<i64: 8, 1>}, {pipeline_mode = #tpu.pipeline_mode<synchronous>, transform_indices = @transform_7, window_bounds = array<i64: 8, 1>}, {pipeline_mode = #tpu.pipeline_mode<synchronous>, transform_indices = @transform_8, window_bounds = array<i64: 8, 1>}, {pipeline_mode = #tpu.pipeline_mode<synchronous>, transform_indices = @transform_9, window_bounds = array<i64: 8, 8>}, {pipeline_mode = #tpu.pipeline_mode<synchronous>, transform_indices = @transform_10, window_bounds = array<i64: 8, 8>}]} {
    %c0_i32 = arith.constant 0 : i32
    %0 = arith.cmpi eq, %arg0, %c0_i32 : i32
    %1 = arith.extui %0 : i1 to i32
    %c0_i32_0 = arith.constant 0 : i32
    %2 = arith.cmpi ne, %1, %c0_i32_0 : i32
    scf.if %2 {
      %cst_31 = arith.constant 0.000000e+00 : f32
      %32 = vector.broadcast %cst_31 : f32 to vector<8x8xf32>
      %c0_32 = arith.constant 0 : index
      %c0_33 = arith.constant 0 : index
      %33 = vector.load %arg12[%c0_32, %c0_33] : memref<8x8xf32, #tpu.memory_space<vmem>>, vector<8x8xf32>
      tpu.vector_store %arg12[%c0_32, %c0_33], %32 {strides = array<i32>} : memref<8x8xf32, #tpu.memory_space<vmem>>, vector<8x8xf32>,
      %cst_34 = arith.constant 0.000000e+00 : f32
      %34 = vector.broadcast %cst_34 : f32 to vector<8x8xf32>
      %c0_35 = arith.constant 0 : index
      %c0_36 = arith.constant 0 : index
      %35 = vector.load %arg13[%c0_35, %c0_36] : memref<8x8xf32, #tpu.memory_space<vmem>>, vector<8x8xf32>
      tpu.vector_store %arg13[%c0_35, %c0_36], %34 {strides = array<i32>} : memref<8x8xf32, #tpu.memory_space<vmem>>, vector<8x8xf32>,
    } else {
    }
    %c0 = arith.constant 0 : index
    %c0_1 = arith.constant 0 : index
    %3 = vector.load %arg4[%c0, %c0_1] : memref<8x16xbf16, #tpu.memory_space<vmem>>, vector<8x16xbf16>
    %c0_2 = arith.constant 0 : index
    %c0_3 = arith.constant 0 : index
    %4 = vector.load %arg1[%c0_2, %c0_3] : memref<16x512xbf16, #tpu.memory_space<vmem>>, vector<16x512xbf16>
    %cst = arith.constant dense<0.000000e+00> : vector<8x512xf32>
    %5 = tpu.matmul %3, %4, %cst {dimension_numbers = #tpu.dot_dimension_numbers<[1], [0], [0], [1], [0, 0, 1, 1], [], []>} : vector<8x16xbf16>, vector<16x512xbf16>, vector<8x512xf32> -> vector<8x512xf32>
    %c0_4 = arith.constant 0 : index
    %c0_5 = arith.constant 0 : index
    %6 = vector.load %arg7[%c0_4, %c0_5] : memref<8x1xf32, #tpu.memory_space<vmem>>, vector<8x1xf32>
    %7 = vector.broadcast %6 : vector<8x1xf32> to vector<8x512xf32>
    %8 = arith.addf %5, %7 : vector<8x512xf32>
    %c0_6 = arith.constant 0 : index
    %c0_7 = arith.constant 0 : index
    %9 = vector.load %arg5[%c0_6, %c0_7] : memref<8x16xbf16, #tpu.memory_space<vmem>>, vector<8x16xbf16>
    %c0_8 = arith.constant 0 : index
    %c0_9 = arith.constant 0 : index
    %10 = vector.load %arg2[%c0_8, %c0_9] : memref<16x512xbf16, #tpu.memory_space<vmem>>, vector<16x512xbf16>
    %cst_10 = arith.constant dense<0.000000e+00> : vector<8x512xf32>
    %11 = tpu.matmul %9, %10, %cst_10 {dimension_numbers = #tpu.dot_dimension_numbers<[1], [0], [0], [1], [0, 0, 1, 1], [], []>} : vector<8x16xbf16>, vector<16x512xbf16>, vector<8x512xf32> -> vector<8x512xf32>
    %c0_11 = arith.constant 0 : index
    %c0_12 = arith.constant 0 : index
    %12 = vector.load %arg8[%c0_11, %c0_12] : memref<8x1xf32, #tpu.memory_space<vmem>>, vector<8x1xf32>
    %13 = vector.broadcast %12 : vector<8x1xf32> to vector<8x512xf32>
    %14 = arith.addf %11, %13 : vector<8x512xf32>
    %c0_13 = arith.constant 0 : index
    %c0_14 = arith.constant 0 : index
    %15 = vector.load %arg6[%c0_13, %c0_14] : memref<8x16xbf16, #tpu.memory_space<vmem>>, vector<8x16xbf16>
    %c0_15 = arith.constant 0 : index
    %c0_16 = arith.constant 0 : index
    %16 = vector.load %arg3[%c0_15, %c0_16] : memref<16x512xbf16, #tpu.memory_space<vmem>>, vector<16x512xbf16>
    %cst_17 = arith.constant dense<0.000000e+00> : vector<8x512xf32>
    %17 = tpu.matmul %15, %16, %cst_17 {dimension_numbers = #tpu.dot_dimension_numbers<[1], [0], [0], [1], [0, 0, 1, 1], [], []>} : vector<8x16xbf16>, vector<16x512xbf16>, vector<8x512xf32> -> vector<8x512xf32>
    %c0_18 = arith.constant 0 : index
    %c0_19 = arith.constant 0 : index
    %18 = vector.load %arg9[%c0_18, %c0_19] : memref<8x1xf32, #tpu.memory_space<vmem>>, vector<8x1xf32>
    %19 = vector.broadcast %18 : vector<8x1xf32> to vector<8x512xf32>
    %20 = arith.addf %17, %19 : vector<8x512xf32>
    %c0_20 = arith.constant 0 : index
    %c0_21 = arith.constant 0 : index
    %21 = vector.load %arg12[%c0_20, %c0_21] : memref<8x8xf32, #tpu.memory_space<vmem>>, vector<8x8xf32>
    %cst_22 = arith.constant dense<0.000000e+00> : vector<8x8xf32>
    %22 = tpu.matmul %8, %14, %cst_22 {dimension_numbers = #tpu.dot_dimension_numbers<[1], [1], [0], [0], [0, 0, 1, 0], [], []>} : vector<8x512xf32>, vector<8x512xf32>, vector<8x8xf32> -> vector<8x8xf32>
    %23 = arith.addf %21, %22 : vector<8x8xf32>
    %c0_23 = arith.constant 0 : index
    %c0_24 = arith.constant 0 : index
    %24 = vector.load %arg12[%c0_23, %c0_24] : memref<8x8xf32, #tpu.memory_space<vmem>>, vector<8x8xf32>
    tpu.vector_store %arg12[%c0_23, %c0_24], %23 {strides = array<i32>} : memref<8x8xf32, #tpu.memory_space<vmem>>, vector<8x8xf32>,
    %c0_25 = arith.constant 0 : index
    %c0_26 = arith.constant 0 : index
    %25 = vector.load %arg13[%c0_25, %c0_26] : memref<8x8xf32, #tpu.memory_space<vmem>>, vector<8x8xf32>
    %cst_27 = arith.constant dense<0.000000e+00> : vector<8x8xf32>
    %26 = tpu.matmul %8, %20, %cst_27 {dimension_numbers = #tpu.dot_dimension_numbers<[1], [1], [0], [0], [0, 0, 1, 0], [], []>} : vector<8x512xf32>, vector<8x512xf32>, vector<8x8xf32> -> vector<8x8xf32>
    %27 = arith.addf %25, %26 : vector<8x8xf32>
    %c0_28 = arith.constant 0 : index
    %c0_29 = arith.constant 0 : index
    %28 = vector.load %arg13[%c0_28, %c0_29] : memref<8x8xf32, #tpu.memory_space<vmem>>, vector<8x8xf32>
    tpu.vector_store %arg13[%c0_28, %c0_29], %27 {strides = array<i32>} : memref<8x8xf32, #tpu.memory_space<vmem>>, vector<8x8xf32>,
    %c3_i32 = arith.constant 3 : i32
    %29 = arith.cmpi eq, %arg0, %c3_i32 : i32
    %30 = arith.extui %29 : i1 to i32
    %c0_i32_30 = arith.constant 0 : i32
    %31 = arith.cmpi ne, %30, %c0_i32_30 : i32
    scf.if %31 {
      %c0_31 = arith.constant 0 : index
      %c0_32 = arith.constant 0 : index
      %32 = vector.load %arg12[%c0_31, %c0_32] : memref<8x8xf32, #tpu.memory_space<vmem>>, vector<8x8xf32>
      %cst_33 = arith.constant dense<0xFF800000> : vector<8xf32>
      %33 = vector.multi_reduction <maximumf>, %32, %cst_33 [1] : vector<8x8xf32> to vector<8xf32>
      %34 = vector.shape_cast %33 : vector<8xf32> to vector<8x1xf32>
      %35 = vector.broadcast %34 : vector<8x1xf32> to vector<8x8xf32>
      %36 = arith.subf %32, %35 : vector<8x8xf32>
      %37 = math.exp %36 : vector<8x8xf32>
      %cst_34 = arith.constant dense<0.000000e+00> : vector<8xf32>
      %38 = vector.multi_reduction <add>, %37, %cst_34 [1] : vector<8x8xf32> to vector<8xf32>
      %39 = vector.shape_cast %38 : vector<8xf32> to vector<8x1xf32>
      %40 = tpu.reciprocal %39 {approx = true} : vector<8x1xf32> -> vector<8x1xf32>
      %41 = vector.broadcast %40 : vector<8x1xf32> to vector<8x8xf32>
      %42 = arith.mulf %37, %41 : vector<8x8xf32>
      %c0_35 = arith.constant 0 : index
      %c0_36 = arith.constant 0 : index
      %43 = vector.load %arg10[%c0_35, %c0_36] : memref<8x8xf32, #tpu.memory_space<vmem>>, vector<8x8xf32>
      tpu.vector_store %arg10[%c0_35, %c0_36], %42 {strides = array<i32>} : memref<8x8xf32, #tpu.memory_space<vmem>>, vector<8x8xf32>,
      %c0_37 = arith.constant 0 : index
      %c0_38 = arith.constant 0 : index
      %44 = vector.load %arg13[%c0_37, %c0_38] : memref<8x8xf32, #tpu.memory_space<vmem>>, vector<8x8xf32>
      %cst_39 = arith.constant dense<0xFF800000> : vector<8xf32>
      %45 = vector.multi_reduction <maximumf>, %44, %cst_39 [1] : vector<8x8xf32> to vector<8xf32>
      %46 = vector.shape_cast %45 : vector<8xf32> to vector<8x1xf32>
      %47 = vector.broadcast %46 : vector<8x1xf32> to vector<8x8xf32>
      %48 = arith.subf %44, %47 : vector<8x8xf32>
      %49 = math.exp %48 : vector<8x8xf32>
      %cst_40 = arith.constant dense<0.000000e+00> : vector<8xf32>
      %50 = vector.multi_reduction <add>, %49, %cst_40 [1] : vector<8x8xf32> to vector<8xf32>
      %51 = vector.shape_cast %50 : vector<8xf32> to vector<8x1xf32>
      %52 = tpu.reciprocal %51 {approx = true} : vector<8x1xf32> -> vector<8x1xf32>
      %53 = vector.broadcast %52 : vector<8x1xf32> to vector<8x8xf32>
      %54 = arith.mulf %49, %53 : vector<8x8xf32>
      %c0_41 = arith.constant 0 : index
      %c0_42 = arith.constant 0 : index
      %55 = vector.load %arg11[%c0_41, %c0_42] : memref<8x8xf32, #tpu.memory_space<vmem>>, vector<8x8xf32>
      tpu.vector_store %arg11[%c0_41, %c0_42], %54 {strides = array<i32>} : memref<8x8xf32, #tpu.memory_space<vmem>>, vector<8x8xf32>,
    } else {
    }
    return
  }
  func.func @transform_0(%arg0: i32) -> (i32, i32) {
    %c0_i32 = arith.constant 0 : i32
    %c0_i32_0 = arith.constant 0 : i32
    return %c0_i32, %arg0 : i32, i32
  }
  func.func @transform_1(%arg0: i32) -> (i32, i32) {
    %c0_i32 = arith.constant 0 : i32
    %c0_i32_0 = arith.constant 0 : i32
    return %c0_i32, %arg0 : i32, i32
  }
  func.func @transform_2(%arg0: i32) -> (i32, i32) {
    %c0_i32 = arith.constant 0 : i32
    %c0_i32_0 = arith.constant 0 : i32
    return %c0_i32, %arg0 : i32, i32
  }
  func.func @transform_3(%arg0: i32) -> (i32, i32) {
    %c0_i32 = arith.constant 0 : i32
    %c0_i32_0 = arith.constant 0 : i32
    %c0_i32_1 = arith.constant 0 : i32
    return %c0_i32, %c0_i32_0 : i32, i32
  }
  func.func @transform_4(%arg0: i32) -> (i32, i32) {
    %c0_i32 = arith.constant 0 : i32
    %c0_i32_0 = arith.constant 0 : i32
    %c0_i32_1 = arith.constant 0 : i32
    return %c0_i32, %c0_i32_0 : i32, i32
  }
  func.func @transform_5(%arg0: i32) -> (i32, i32) {
    %c0_i32 = arith.constant 0 : i32
    %c0_i32_0 = arith.constant 0 : i32
    %c0_i32_1 = arith.constant 0 : i32
    return %c0_i32, %c0_i32_0 : i32, i32
  }
  func.func @transform_6(%arg0: i32) -> (i32, i32) {
    %c0_i32 = arith.constant 0 : i32
    %c0_i32_0 = arith.constant 0 : i32
    %c0_i32_1 = arith.constant 0 : i32
    return %c0_i32, %c0_i32_0 : i32, i32
  }
  func.func @transform_7(%arg0: i32) -> (i32, i32) {
    %c0_i32 = arith.constant 0 : i32
    %c0_i32_0 = arith.constant 0 : i32
    %c0_i32_1 = arith.constant 0 : i32
    return %c0_i32, %c0_i32_0 : i32, i32
  }
  func.func @transform_8(%arg0: i32) -> (i32, i32) {
    %c0_i32 = arith.constant 0 : i32
    %c0_i32_0 = arith.constant 0 : i32
    %c0_i32_1 = arith.constant 0 : i32
    return %c0_i32, %c0_i32_0 : i32, i32
  }
  func.func @transform_9(%arg0: i32) -> (i32, i32) {
    %c0_i32 = arith.constant 0 : i32
    %c0_i32_0 = arith.constant 0 : i32
    %c0_i32_1 = arith.constant 0 : i32
    return %c0_i32, %c0_i32_0 : i32, i32
  }
  func.func @transform_10(%arg0: i32) -> (i32, i32) {
    %c0_i32 = arith.constant 0 : i32
    %c0_i32_0 = arith.constant 0 : i32
    %c0_i32_1 = arith.constant 0 : i32
    return %c0_i32, %c0_i32_0 : i32, i32
  }
}

module attributes {stable_mosaic.version = 11 : i64} {
  func.func @_pv_kernel(%arg0: i32, %arg1: memref<8x8xf32, #tpu.memory_space<vmem>>, %arg2: memref<8x8xf32, #tpu.memory_space<vmem>>, %arg3: memref<8x8xbf16, #tpu.memory_space<vmem>>, %arg4: memref<8x8xbf16, #tpu.memory_space<vmem>>, %arg5: memref<8x1xf32, #tpu.memory_space<vmem>>, %arg6: memref<8x1xf32, #tpu.memory_space<vmem>>, %arg7: memref<8x1024xbf16, #tpu.memory_space<vmem>>, %arg8: memref<8x1024xbf16, #tpu.memory_space<vmem>>, %arg9: memref<8x1024xf32, #tpu.memory_space<vmem>>, %arg10: memref<8x1024xf32, #tpu.memory_space<vmem>>) attributes {dimension_semantics = [#tpu.dimension_semantics<parallel>], iteration_bounds = array<i64: 4>, scalar_prefetch = 0 : i64, scratch_operands = 0 : i64, tpu.core_type = #tpu.core_type<tc>, window_params = [{pipeline_mode = #tpu.pipeline_mode<synchronous>, transform_indices = @transform_0, window_bounds = array<i64: 8, 8>}, {pipeline_mode = #tpu.pipeline_mode<synchronous>, transform_indices = @transform_1, window_bounds = array<i64: 8, 8>}, {pipeline_mode = #tpu.pipeline_mode<synchronous>, transform_indices = @transform_2, window_bounds = array<i64: 8, 8>}, {pipeline_mode = #tpu.pipeline_mode<synchronous>, transform_indices = @transform_3, window_bounds = array<i64: 8, 8>}, {pipeline_mode = #tpu.pipeline_mode<synchronous>, transform_indices = @transform_4, window_bounds = array<i64: 8, 1>}, {pipeline_mode = #tpu.pipeline_mode<synchronous>, transform_indices = @transform_5, window_bounds = array<i64: 8, 1>}, {transform_indices = @transform_6, window_bounds = array<i64: 8, 1024>}, {transform_indices = @transform_7, window_bounds = array<i64: 8, 1024>}, {transform_indices = @transform_8, window_bounds = array<i64: 8, 1024>}, {transform_indices = @transform_9, window_bounds = array<i64: 8, 1024>}]} {
    %c0 = arith.constant 0 : index
    %c0_0 = arith.constant 0 : index
    %0 = vector.load %arg3[%c0, %c0_0] : memref<8x8xbf16, #tpu.memory_space<vmem>>, vector<8x8xbf16>
    %c0_1 = arith.constant 0 : index
    %c0_2 = arith.constant 0 : index
    %1 = vector.load %arg7[%c0_1, %c0_2] : memref<8x1024xbf16, #tpu.memory_space<vmem>>, vector<8x1024xbf16>
    %cst = arith.constant dense<0.000000e+00> : vector<8x1024xf32>
    %2 = tpu.matmul %0, %1, %cst {dimension_numbers = #tpu.dot_dimension_numbers<[1], [0], [0], [1], [0, 0, 1, 1], [], []>} : vector<8x8xbf16>, vector<8x1024xbf16>, vector<8x1024xf32> -> vector<8x1024xf32>
    %c0_3 = arith.constant 0 : index
    %c0_4 = arith.constant 0 : index
    %3 = vector.load %arg5[%c0_3, %c0_4] : memref<8x1xf32, #tpu.memory_space<vmem>>, vector<8x1xf32>
    %4 = vector.broadcast %3 : vector<8x1xf32> to vector<8x1024xf32>
    %5 = arith.addf %2, %4 : vector<8x1024xf32>
    %c0_5 = arith.constant 0 : index
    %c0_6 = arith.constant 0 : index
    %6 = vector.load %arg4[%c0_5, %c0_6] : memref<8x8xbf16, #tpu.memory_space<vmem>>, vector<8x8xbf16>
    %c0_7 = arith.constant 0 : index
    %c0_8 = arith.constant 0 : index
    %7 = vector.load %arg8[%c0_7, %c0_8] : memref<8x1024xbf16, #tpu.memory_space<vmem>>, vector<8x1024xbf16>
    %cst_9 = arith.constant dense<0.000000e+00> : vector<8x1024xf32>
    %8 = tpu.matmul %6, %7, %cst_9 {dimension_numbers = #tpu.dot_dimension_numbers<[1], [0], [0], [1], [0, 0, 1, 1], [], []>} : vector<8x8xbf16>, vector<8x1024xbf16>, vector<8x1024xf32> -> vector<8x1024xf32>
    %c0_10 = arith.constant 0 : index
    %c0_11 = arith.constant 0 : index
    %9 = vector.load %arg6[%c0_10, %c0_11] : memref<8x1xf32, #tpu.memory_space<vmem>>, vector<8x1xf32>
    %10 = vector.broadcast %9 : vector<8x1xf32> to vector<8x1024xf32>
    %11 = arith.addf %8, %10 : vector<8x1024xf32>
    %c0_12 = arith.constant 0 : index
    %c0_13 = arith.constant 0 : index
    %12 = vector.load %arg1[%c0_12, %c0_13] : memref<8x8xf32, #tpu.memory_space<vmem>>, vector<8x8xf32>
    %cst_14 = arith.constant dense<0.000000e+00> : vector<8x1024xf32>
    %13 = tpu.matmul %12, %5, %cst_14 {dimension_numbers = #tpu.dot_dimension_numbers<[1], [0], [0], [1], [0, 0, 1, 1], [], []>} : vector<8x8xf32>, vector<8x1024xf32>, vector<8x1024xf32> -> vector<8x1024xf32>
    %c0_15 = arith.constant 0 : index
    %c0_16 = arith.constant 0 : index
    %14 = vector.load %arg2[%c0_15, %c0_16] : memref<8x8xf32, #tpu.memory_space<vmem>>, vector<8x8xf32>
    %cst_17 = arith.constant dense<0.000000e+00> : vector<8x1024xf32>
    %15 = tpu.matmul %14, %11, %cst_17 {dimension_numbers = #tpu.dot_dimension_numbers<[1], [0], [0], [1], [0, 0, 1, 1], [], []>} : vector<8x8xf32>, vector<8x1024xf32>, vector<8x1024xf32> -> vector<8x1024xf32>
    %16 = arith.addf %13, %15 : vector<8x1024xf32>
    %c0_18 = arith.constant 0 : index
    %c0_19 = arith.constant 0 : index
    %17 = vector.load %arg9[%c0_18, %c0_19] : memref<8x1024xf32, #tpu.memory_space<vmem>>, vector<8x1024xf32>
    %18 = arith.addf %16, %17 : vector<8x1024xf32>
    %c0_20 = arith.constant 0 : index
    %c0_21 = arith.constant 0 : index
    %19 = vector.load %arg10[%c0_20, %c0_21] : memref<8x1024xf32, #tpu.memory_space<vmem>>, vector<8x1024xf32>
    tpu.vector_store %arg10[%c0_20, %c0_21], %18 {strides = array<i32>} : memref<8x1024xf32, #tpu.memory_space<vmem>>, vector<8x1024xf32>,
    return
  }
  func.func @transform_0(%arg0: i32) -> (i32, i32) {
    %c0_i32 = arith.constant 0 : i32
    %c0_i32_0 = arith.constant 0 : i32
    %c0_i32_1 = arith.constant 0 : i32
    return %c0_i32, %c0_i32_0 : i32, i32
  }
  func.func @transform_1(%arg0: i32) -> (i32, i32) {
    %c0_i32 = arith.constant 0 : i32
    %c0_i32_0 = arith.constant 0 : i32
    %c0_i32_1 = arith.constant 0 : i32
    return %c0_i32, %c0_i32_0 : i32, i32
  }
  func.func @transform_2(%arg0: i32) -> (i32, i32) {
    %c0_i32 = arith.constant 0 : i32
    %c0_i32_0 = arith.constant 0 : i32
    %c0_i32_1 = arith.constant 0 : i32
    return %c0_i32, %c0_i32_0 : i32, i32
  }
  func.func @transform_3(%arg0: i32) -> (i32, i32) {
    %c0_i32 = arith.constant 0 : i32
    %c0_i32_0 = arith.constant 0 : i32
    %c0_i32_1 = arith.constant 0 : i32
    return %c0_i32, %c0_i32_0 : i32, i32
  }
  func.func @transform_4(%arg0: i32) -> (i32, i32) {
    %c0_i32 = arith.constant 0 : i32
    %c0_i32_0 = arith.constant 0 : i32
    %c0_i32_1 = arith.constant 0 : i32
    return %c0_i32, %c0_i32_0 : i32, i32
  }
  func.func @transform_5(%arg0: i32) -> (i32, i32) {
    %c0_i32 = arith.constant 0 : i32
    %c0_i32_0 = arith.constant 0 : i32
    %c0_i32_1 = arith.constant 0 : i32
    return %c0_i32, %c0_i32_0 : i32, i32
  }
  func.func @transform_6(%arg0: i32) -> (i32, i32) {
    %c0_i32 = arith.constant 0 : i32
    %c0_i32_0 = arith.constant 0 : i32
    return %c0_i32, %arg0 : i32, i32
  }
  func.func @transform_7(%arg0: i32) -> (i32, i32) {
    %c0_i32 = arith.constant 0 : i32
    %c0_i32_0 = arith.constant 0 : i32
    return %c0_i32, %arg0 : i32, i32
  }
  func.func @transform_8(%arg0: i32) -> (i32, i32) {
    %c0_i32 = arith.constant 0 : i32
    %c0_i32_0 = arith.constant 0 : i32
    return %c0_i32, %arg0 : i32, i32
  }
  func.func @transform_9(%arg0: i32) -> (i32, i32) {
    %c0_i32 = arith.constant 0 : i32
    %c0_i32_0 = arith.constant 0 : i32
    return %c0_i32, %arg0 : i32, i32
  }
}

</mosaic_0001>

<llo_original>
// kernel: coatten_forward.2
$region0: #{coatten_forward.2}
  #allocation0 [shape = 'u32[]', space=smem, size = 0x4, offset = 0x4, fixed_abs, tag = 'smem constant byte address 0x4 - core index']
  #allocation1 [shape = 'u32[144,128]{1,0:T(1,128)}', space=vmem, size = 0x12000, scoped, tag = 'internal scratch']
  #allocation2 [shape = 'f32[8,8]{1,0:T(8,128)}', space=vmem, size = 0x1000, scoped, tag = 'scratch operand']
  #allocation3 [shape = 'f32[8,8]{1,0:T(8,128)}', space=vmem, size = 0x1000, scoped, tag = 'scratch operand']
  %s0 = inlined_call_operand.vmem [shape: bf16[16,2048], index: 0, kind: input, shape index: {}]
  %s1 = inlined_call_operand.vmem [shape: bf16[16,2048], index: 1, kind: input, shape index: {}]
  %s2 = inlined_call_operand.vmem [shape: bf16[16,2048], index: 2, kind: input, shape index: {}]
  %s3 = inlined_call_operand.vmem [shape: bf16[8,16], index: 3, kind: input, shape index: {}]
  %s4 = inlined_call_operand.vmem [shape: bf16[8,16], index: 4, kind: input, shape index: {}]
  %s5 = inlined_call_operand.vmem [shape: bf16[8,16], index: 5, kind: input, shape index: {}]
  %s6 = inlined_call_operand.vmem [shape: f32[8,1], index: 6, kind: input, shape index: {}]
  %s7 = inlined_call_operand.vmem [shape: f32[8,1], index: 7, kind: input, shape index: {}]
  %s8 = inlined_call_operand.vmem [shape: f32[8,1], index: 8, kind: input, shape index: {}]
  %s9 = inlined_call_operand.vmem [shape: f32[8,8], index: 9, kind: output, shape index: {0}]
  %s10 = inlined_call_operand.vmem [shape: f32[8,8], index: 10, kind: output, shape index: {1}]
  %11 = xla_tuple %s9, %s10
  %s12 = sld [smem:[#allocation0]]
  $region154: #{coatten_forward.2} parent=0
    _
  %s14 = ssub.s32 1, %s12
  %s15 = scalar_select 0, %s14, %s12
  $region1: #{coatten_forward.2} parent=0
    #allocation4 [shape = 'u8[32768]{0}', space=vmem, size = 0x8000, scoped, tag = 'input window, operand 0']
    #allocation5 [shape = 'u8[32768]{0}', space=vmem, size = 0x8000, scoped, tag = 'input window, operand 1']
    #allocation6 [shape = 'u8[32768]{0}', space=vmem, size = 0x8000, scoped, tag = 'input window, operand 2']
    loop: start=0, step=1, limit=6
    $region2: #{coatten_forward.2} parent=1 // loop_pre_header
      _
    $region3: #{coatten_forward.2} parent=1 // loop_header
      %s17 = sphi 0, %s21
      %p18 = scmp.ge.s32.totalorder %s17, 6
      %s27 = sphi 0, %s29
      %s30 = sphi 0, %s27
      %s31 = sphi 0, %s30
      %s47 = sphi 0, %s31
      %s53 = sphi 0, %s55
      %s56 = sphi 0, %s53
      %s57 = sphi 0, %s56
      %s73 = sphi 0, %s57
      %s79 = sphi 0, %s81
      %s82 = sphi 0, %s79
      %s83 = sphi 0, %s82
      %s99 = sphi 0, %s83
      %s103 = sphi 0, %s103
      %s105 = sphi 0, %s103
      %s106 = sphi 0, %s105
      %s120 = sphi 0, %s106
      %s124 = sphi 0, %s124
      %s126 = sphi 0, %s124
      %s127 = sphi 0, %s126
      %s141 = sphi 0, %s127
      %s145 = sphi 0, %s145
      %s147 = sphi 0, %s145
      %s148 = sphi 0, %s147
      %s162 = sphi 0, %s148
      %s166 = sphi 0, %s166
      %s168 = sphi 0, %s166
      %s169 = sphi 0, %s168
      %s183 = sphi 0, %s169
      %s187 = sphi 0, %s187
      %s189 = sphi 0, %s187
      %s190 = sphi 0, %s189
      %s204 = sphi 0, %s190
      %s208 = sphi 0, %s208
      %s210 = sphi 0, %s208
      %s211 = sphi 0, %s210
      %s225 = sphi 0, %s211
      %s229 = sphi 0, %s229
      %s231 = sphi 0, %s229
      %s232 = sphi 0, %s231
      %s246 = sphi 0, %s232
      %s250 = sphi 0, %s250
      %s252 = sphi 0, %s250
      %s253 = sphi 0, %s252
      %s267 = sphi 0, %s253
    $region4: #{coatten_forward.2} parent=1 // loop_header_branch
      %20 = sbr.rel (%p18) target = $region8
    $region5: #{coatten_forward.2} parent=1 // loop_body
      %s22 = ssub.s32 %s17, 1
      %s23 = ssub.s32 %s17, 2
      %s24 = sadd.s32 %s17, 1
      %s25 = ssub.s32 %s17, %s24
      %p26 = scmp.eq.s32.totalorder %s25, 0
      %s28 = sadd.s32 %s27, 1
      %s29 = scalar_select %p26, %s27, %s28
      %p32 = pneg %p26
      %p33 = scmp.eq.s32.totalorder %s17, 3
      %p34 = por %p32, %p33
      %p35 = scmp.ne.s32.totalorder %s27, %s30
      %p36 = scmp.eq.s32.totalorder %s17, 0
      %p37 = por %p35, %p36
      %p38 = scmp.ne.s32.totalorder %s27, %s30
      %p39 = scmp.eq.s32.totalorder %s22, 3
      %p40 = por %p38, %p39
      %p41 = scmp.ne.s32.totalorder %s30, %s31
      %p42 = scmp.eq.s32.totalorder %s22, 0
      %p43 = por %p41, %p42
      %p44 = scmp.ne.s32.totalorder %s30, %s31
      %p45 = scmp.eq.s32.totalorder %s23, 3
      %p46 = por %p44, %p45
      %p48 = scmp.ne.s32.totalorder %s31, %s47
      %p49 = scmp.eq.s32.totalorder %s23, 0
      %p50 = por %p48, %p49
      %s51 = ssub.s32 %s17, %s24
      %p52 = scmp.eq.s32.totalorder %s51, 0
      %s54 = sadd.s32 %s53, 1
      %s55 = scalar_select %p52, %s53, %s54
      %p58 = pneg %p52
      %p59 = scmp.eq.s32.totalorder %s17, 3
      %p60 = por %p58, %p59
      %p61 = scmp.ne.s32.totalorder %s53, %s56
      %p62 = scmp.eq.s32.totalorder %s17, 0
      %p63 = por %p61, %p62
      %p64 = scmp.ne.s32.totalorder %s53, %s56
      %p65 = scmp.eq.s32.totalorder %s22, 3
      %p66 = por %p64, %p65
      %p67 = scmp.ne.s32.totalorder %s56, %s57
      %p68 = scmp.eq.s32.totalorder %s22, 0
      %p69 = por %p67, %p68
      %p70 = scmp.ne.s32.totalorder %s56, %s57
      %p71 = scmp.eq.s32.totalorder %s23, 3
      %p72 = por %p70, %p71
      %p74 = scmp.ne.s32.totalorder %s57, %s73
      %p75 = scmp.eq.s32.totalorder %s23, 0
      %p76 = por %p74, %p75
      %s77 = ssub.s32 %s17, %s24
      %p78 = scmp.eq.s32.totalorder %s77, 0
      %s80 = sadd.s32 %s79, 1
      %s81 = scalar_select %p78, %s79, %s80
      %p84 = pneg %p78
      %p85 = scmp.eq.s32.totalorder %s17, 3
      %p86 = por %p84, %p85
      %p87 = scmp.ne.s32.totalorder %s79, %s82
      %p88 = scmp.eq.s32.totalorder %s17, 0
      %p89 = por %p87, %p88
      %p90 = scmp.ne.s32.totalorder %s79, %s82
      %p91 = scmp.eq.s32.totalorder %s22, 3
      %p92 = por %p90, %p91
      %p93 = scmp.ne.s32.totalorder %s82, %s83
      %p94 = scmp.eq.s32.totalorder %s22, 0
      %p95 = por %p93, %p94
      %p96 = scmp.ne.s32.totalorder %s82, %s83
      %p97 = scmp.eq.s32.totalorder %s23, 3
      %p98 = por %p96, %p97
      %p100 = scmp.ne.s32.totalorder %s83, %s99
      %p101 = scmp.eq.s32.totalorder %s23, 0
      %p102 = por %p100, %p101
      %s104 = sadd.s32 %s103, 1
      %p107 = scmp.eq.s32.totalorder %s17, 3
      %p108 = scmp.ne.s32.totalorder %s103, %s105
      %p109 = scmp.eq.s32.totalorder %s17, 0
      %p110 = por %p108, %p109
      %p111 = scmp.ne.s32.totalorder %s103, %s105
      %p112 = scmp.eq.s32.totalorder %s22, 3
      %p113 = por %p111, %p112
      %p114 = scmp.ne.s32.totalorder %s105, %s106
      %p115 = scmp.eq.s32.totalorder %s22, 0
      %p116 = por %p114, %p115
      %p117 = scmp.ne.s32.totalorder %s105, %s106
      %p118 = scmp.eq.s32.totalorder %s23, 3
      %p119 = por %p117, %p118
      %p121 = scmp.ne.s32.totalorder %s106, %s120
      %p122 = scmp.eq.s32.totalorder %s23, 0
      %p123 = por %p121, %p122
      %s125 = sadd.s32 %s124, 1
      %p128 = scmp.eq.s32.totalorder %s17, 3
      %p129 = scmp.ne.s32.totalorder %s124, %s126
      %p130 = scmp.eq.s32.totalorder %s17, 0
      %p131 = por %p129, %p130
      %p132 = scmp.ne.s32.totalorder %s124, %s126
      %p133 = scmp.eq.s32.totalorder %s22, 3
      %p134 = por %p132, %p133
      %p135 = scmp.ne.s32.totalorder %s126, %s127
      %p136 = scmp.eq.s32.totalorder %s22, 0
      %p137 = por %p135, %p136
      %p138 = scmp.ne.s32.totalorder %s126, %s127
      %p139 = scmp.eq.s32.totalorder %s23, 3
      %p140 = por %p138, %p139
      %p142 = scmp.ne.s32.totalorder %s127, %s141
      %p143 = scmp.eq.s32.totalorder %s23, 0
      %p144 = por %p142, %p143
      %s146 = sadd.s32 %s145, 1
      %p149 = scmp.eq.s32.totalorder %s17, 3
      %p150 = scmp.ne.s32.totalorder %s145, %s147
      %p151 = scmp.eq.s32.totalorder %s17, 0
      %p152 = por %p150, %p151
      %p153 = scmp.ne.s32.totalorder %s145, %s147
      %p154 = scmp.eq.s32.totalorder %s22, 3
      %p155 = por %p153, %p154
      %p156 = scmp.ne.s32.totalorder %s147, %s148
      %p157 = scmp.eq.s32.totalorder %s22, 0
      %p158 = por %p156, %p157
      %p159 = scmp.ne.s32.totalorder %s147, %s148
      %p160 = scmp.eq.s32.totalorder %s23, 3
      %p161 = por %p159, %p160
      %p163 = scmp.ne.s32.totalorder %s148, %s162
      %p164 = scmp.eq.s32.totalorder %s23, 0
      %p165 = por %p163, %p164
      %s167 = sadd.s32 %s166, 1
      %p170 = scmp.eq.s32.totalorder %s17, 3
      %p171 = scmp.ne.s32.totalorder %s166, %s168
      %p172 = scmp.eq.s32.totalorder %s17, 0
      %p173 = por %p171, %p172
      %p174 = scmp.ne.s32.totalorder %s166, %s168
      %p175 = scmp.eq.s32.totalorder %s22, 3
      %p176 = por %p174, %p175
      %p177 = scmp.ne.s32.totalorder %s168, %s169
      %p178 = scmp.eq.s32.totalorder %s22, 0
      %p179 = por %p177, %p178
      %p180 = scmp.ne.s32.totalorder %s168, %s169
      %p181 = scmp.eq.s32.totalorder %s23, 3
      %p182 = por %p180, %p181
      %p184 = scmp.ne.s32.totalorder %s169, %s183
      %p185 = scmp.eq.s32.totalorder %s23, 0
      %p186 = por %p184, %p185
      %s188 = sadd.s32 %s187, 1
      %p191 = scmp.eq.s32.totalorder %s17, 3
      %p192 = scmp.ne.s32.totalorder %s187, %s189
      %p193 = scmp.eq.s32.totalorder %s17, 0
      %p194 = por %p192, %p193
      %p195 = scmp.ne.s32.totalorder %s187, %s189
      %p196 = scmp.eq.s32.totalorder %s22, 3
      %p197 = por %p195, %p196
      %p198 = scmp.ne.s32.totalorder %s189, %s190
      %p199 = scmp.eq.s32.totalorder %s22, 0
      %p200 = por %p198, %p199
      %p201 = scmp.ne.s32.totalorder %s189, %s190
      %p202 = scmp.eq.s32.totalorder %s23, 3
      %p203 = por %p201, %p202
      %p205 = scmp.ne.s32.totalorder %s190, %s204
      %p206 = scmp.eq.s32.totalorder %s23, 0
      %p207 = por %p205, %p206
      %s209 = sadd.s32 %s208, 1
      %p212 = scmp.eq.s32.totalorder %s17, 3
      %p213 = scmp.ne.s32.totalorder %s208, %s210
      %p214 = scmp.eq.s32.totalorder %s17, 0
      %p215 = por %p213, %p214
      %p216 = scmp.ne.s32.totalorder %s208, %s210
      %p217 = scmp.eq.s32.totalorder %s22, 3
      %p218 = por %p216, %p217
      %p219 = scmp.ne.s32.totalorder %s210, %s211
      %p220 = scmp.eq.s32.totalorder %s22, 0
      %p221 = por %p219, %p220
      %p222 = scmp.ne.s32.totalorder %s210, %s211
      %p223 = scmp.eq.s32.totalorder %s23, 3
      %p224 = por %p222, %p223
      %p226 = scmp.ne.s32.totalorder %s211, %s225
      %p227 = scmp.eq.s32.totalorder %s23, 0
      %p228 = por %p226, %p227
      %s230 = sadd.s32 %s229, 1
      %p233 = scmp.eq.s32.totalorder %s17, 3
      %p234 = scmp.ne.s32.totalorder %s229, %s231
      %p235 = scmp.eq.s32.totalorder %s17, 0
      %p236 = por %p234, %p235
      %p237 = scmp.ne.s32.totalorder %s229, %s231
      %p238 = scmp.eq.s32.totalorder %s22, 3
      %p239 = por %p237, %p238
      %p240 = scmp.ne.s32.totalorder %s231, %s232
      %p241 = scmp.eq.s32.totalorder %s22, 0
      %p242 = por %p240, %p241
      %p243 = scmp.ne.s32.totalorder %s231, %s232
      %p244 = scmp.eq.s32.totalorder %s23, 3
      %p245 = por %p243, %p244
      %p247 = scmp.ne.s32.totalorder %s232, %s246
      %p248 = scmp.eq.s32.totalorder %s23, 0
      %p249 = por %p247, %p248
      %s251 = sadd.s32 %s250, 1
      %p254 = scmp.eq.s32.totalorder %s17, 3
      %p255 = scmp.ne.s32.totalorder %s250, %s252
      %p256 = scmp.eq.s32.totalorder %s17, 0
      %p257 = por %p255, %p256
      %p258 = scmp.ne.s32.totalorder %s250, %s252
      %p259 = scmp.eq.s32.totalorder %s22, 3
      %p260 = por %p258, %p259
      %p261 = scmp.ne.s32.totalorder %s252, %s253
      %p262 = scmp.eq.s32.totalorder %s22, 0
      %p263 = por %p261, %p262
      %p264 = scmp.ne.s32.totalorder %s252, %s253
      %p265 = scmp.eq.s32.totalorder %s23, 3
      %p266 = por %p264, %p265
      %p268 = scmp.ne.s32.totalorder %s253, %s267
      %p269 = scmp.eq.s32.totalorder %s23, 0
      %p270 = por %p268, %p269
      %p271 = scmp.le.s32.totalorder 1, %s17
      %p272 = scmp.lt.s32.totalorder %s17, 5
      %p273 = pnand %p271, %p272
      %p274 = pneg %p273
      // Predicated region
      $region9: #{coatten_forward.2} parent=5 // pred_check
        _
      $region10: #{coatten_forward.2} parent=5 // pred_check_branch
        %276 = sbr.rel (%p273) target = $region12
      $region11: #{coatten_forward.2} parent=5 // pred_region
        %s277 = ssub.s32 %s17, 1
        // Predicated region
        $region13: #{coatten_forward.2} parent=11 // pred_check
          %p278 = pneg %p116
        $region14: #{coatten_forward.2} parent=11 // pred_check_branch
          %280 = sbr.rel (%p278) target = $region16
        $region15: #{coatten_forward.2} parent=11 // pred_region
          _
        $region16: #{coatten_forward.2} parent=11 // pred_fallthru
          _
        // Predicated region
        $region17: #{coatten_forward.2} parent=11 // pred_check
          %p281 = pneg %p137
        $region18: #{coatten_forward.2} parent=11 // pred_check_branch
          %283 = sbr.rel (%p281) target = $region20
        $region19: #{coatten_forward.2} parent=11 // pred_region
          _
        $region20: #{coatten_forward.2} parent=11 // pred_fallthru
          _
        // Predicated region
        $region21: #{coatten_forward.2} parent=11 // pred_check
          %p284 = pneg %p158
        $region22: #{coatten_forward.2} parent=11 // pred_check_branch
          %286 = sbr.rel (%p284) target = $region24
        $region23: #{coatten_forward.2} parent=11 // pred_region
          _
        $region24: #{coatten_forward.2} parent=11 // pred_fallthru
          _
        // Predicated region
        $region25: #{coatten_forward.2} parent=11 // pred_check
          %p287 = pneg %p179
        $region26: #{coatten_forward.2} parent=11 // pred_check_branch
          %289 = sbr.rel (%p287) target = $region28
        $region27: #{coatten_forward.2} parent=11 // pred_region
          _
        $region28: #{coatten_forward.2} parent=11 // pred_fallthru
          _
        // Predicated region
        $region29: #{coatten_forward.2} parent=11 // pred_check
          %p290 = pneg %p200
        $region30: #{coatten_forward.2} parent=11 // pred_check_branch
          %292 = sbr.rel (%p290) target = $region32
        $region31: #{coatten_forward.2} parent=11 // pred_region
          _
        $region32: #{coatten_forward.2} parent=11 // pred_fallthru
          _
        // Predicated region
        $region33: #{coatten_forward.2} parent=11 // pred_check
          %p293 = pneg %p221
        $region34: #{coatten_forward.2} parent=11 // pred_check_branch
          %295 = sbr.rel (%p293) target = $region36
        $region35: #{coatten_forward.2} parent=11 // pred_region
          _
        $region36: #{coatten_forward.2} parent=11 // pred_fallthru
          _
      $region12: #{coatten_forward.2} parent=5 // pred_fallthru
        _
      %p296 = scmp.lt.s32.totalorder %s17, 4
      // Predicated region
      $region37: #{coatten_forward.2} parent=5 // pred_check
        %p297 = pneg %p296
      $region38: #{coatten_forward.2} parent=5 // pred_check_branch
        %299 = sbr.rel (%p297) target = $region40
      $region39: #{coatten_forward.2} parent=5 // pred_region
        // Predicated region
        $region41: #{coatten_forward.2} parent=39 // pred_check
          %p300 = pneg %p37
        $region42: #{coatten_forward.2} parent=39 // pred_check_branch
          %302 = sbr.rel (%p300) target = $region44
        $region43: #{coatten_forward.2} parent=39 // pred_region
          %s303 = sand.u32 %s27, 1
          %s304 = sand.u32 %s27, 1
          %s305 = smul.addr %s304, 32
          %s306 = scalar_lea.vmem [#allocation4], %s305
          %s307 = smul.u32 4, %s17
          %s308 = smul.addr %s307, 4
          %s309 = scalar_lea.vmem %s0, %s308
          // Predicated region
          $region45: #{coatten_forward.2} parent=43 // pred_check
            _
          $region46: #{coatten_forward.2} parent=43 // pred_check_branch
            %311 = sbr.rel (0) target = $region48
          $region47: #{coatten_forward.2} parent=43 // pred_region
            // Predicated region
            $region49: #{coatten_forward.2} parent=47 // pred_check
              _
            $region50: #{coatten_forward.2} parent=47 // pred_check_branch
              %313 = sbr.rel (0) target = $region52
            $region51: #{coatten_forward.2} parent=47 // pred_region
              loop: start=0, step=1, limit=1
              $region53: #{coatten_forward.2} parent=51 // loop_pre_header
                _
              $region54: #{coatten_forward.2} parent=51 // loop_header
                %s315 = sphi 0, %s319
                %p316 = scmp.ge.s32.totalorder %s315, 1
                %s320 = sphi %s309, %s309
                %s321 = sphi %s306, %s306
              $region55: #{coatten_forward.2} parent=51 // loop_header_branch
                %318 = sbr.rel (%p316) target = $region59
              $region56: #{coatten_forward.2} parent=51 // loop_body
                %v322 = vld [vmem:[%s320] sm:$0xff]
                %323 = vst [vmem:[%s321] sm:$0xff] %v322
                %v324 = vld [vmem:[%s320 + $0x8] sm:$0xff]
                %325 = vst [vmem:[%s321 + $0x8] sm:$0xff] %v324
                %v326 = vld [vmem:[%s320 + $0x40] sm:$0xff]
                %327 = vst [vmem:[%s321 + $0x10] sm:$0xff] %v326
                %v328 = vld [vmem:[%s320 + $0x48] sm:$0xff]
                %329 = vst [vmem:[%s321 + $0x18] sm:$0xff] %v328
              $region57: #{coatten_forward.2} parent=51 // loop_footer
                %s319 = sadd.s32 1, %s315
              $region58: #{coatten_forward.2} parent=51 // loop_footer_branch
                %314 = sbr.rel target = $region54
              $region59: #{coatten_forward.2} parent=51 // loop_exit
                _
            $region52: #{coatten_forward.2} parent=47 // pred_fallthru
              _
            // Predicated region
            $region60: #{coatten_forward.2} parent=47 // pred_check
              _
            $region61: #{coatten_forward.2} parent=47 // pred_check_branch
              %331 = sbr.rel target = $region63
            $region62: #{coatten_forward.2} parent=47 // pred_region
              _
            $region63: #{coatten_forward.2} parent=47 // pred_fallthru
              _
          $region48: #{coatten_forward.2} parent=43 // pred_fallthru
            _
          %332 = vnop
        $region44: #{coatten_forward.2} parent=39 // pred_fallthru
          _
        // Predicated region
        $region64: #{coatten_forward.2} parent=39 // pred_check
          %p333 = pneg %p63
        $region65: #{coatten_forward.2} parent=39 // pred_check_branch
          %335 = sbr.rel (%p333) target = $region67
        $region66: #{coatten_forward.2} parent=39 // pred_region
          %s336 = sand.u32 %s53, 1
          %s337 = sand.u32 %s53, 1
          %s338 = smul.addr %s337, 32
          %s339 = scalar_lea.vmem [#allocation5], %s338
          %s340 = smul.u32 4, %s17
          %s341 = smul.addr %s340, 4
          %s342 = scalar_lea.vmem %s1, %s341
          // Predicated region
          $region68: #{coatten_forward.2} parent=66 // pred_check
            _
          $region69: #{coatten_forward.2} parent=66 // pred_check_branch
            %344 = sbr.rel (0) target = $region71
          $region70: #{coatten_forward.2} parent=66 // pred_region
            // Predicated region
            $region72: #{coatten_forward.2} parent=70 // pred_check
              _
            $region73: #{coatten_forward.2} parent=70 // pred_check_branch
              %346 = sbr.rel (0) target = $region75
            $region74: #{coatten_forward.2} parent=70 // pred_region
              loop: start=0, step=1, limit=1
              $region76: #{coatten_forward.2} parent=74 // loop_pre_header
                _
              $region77: #{coatten_forward.2} parent=74 // loop_header
                %s348 = sphi 0, %s352
                %p349 = scmp.ge.s32.totalorder %s348, 1
                %s353 = sphi %s342, %s342
                %s354 = sphi %s339, %s339
              $region78: #{coatten_forward.2} parent=74 // loop_header_branch
                %351 = sbr.rel (%p349) target = $region82
              $region79: #{coatten_forward.2} parent=74 // loop_body
                %v355 = vld [vmem:[%s353] sm:$0xff]
                %356 = vst [vmem:[%s354] sm:$0xff] %v355
                %v357 = vld [vmem:[%s353 + $0x8] sm:$0xff]
                %358 = vst [vmem:[%s354 + $0x8] sm:$0xff] %v357
                %v359 = vld [vmem:[%s353 + $0x40] sm:$0xff]
                %360 = vst [vmem:[%s354 + $0x10] sm:$0xff] %v359
                %v361 = vld [vmem:[%s353 + $0x48] sm:$0xff]
                %362 = vst [vmem:[%s354 + $0x18] sm:$0xff] %v361
              $region80: #{coatten_forward.2} parent=74 // loop_footer
                %s352 = sadd.s32 1, %s348
              $region81: #{coatten_forward.2} parent=74 // loop_footer_branch
                %347 = sbr.rel target = $region77
              $region82: #{coatten_forward.2} parent=74 // loop_exit
                _
            $region75: #{coatten_forward.2} parent=70 // pred_fallthru
              _
            // Predicated region
            $region83: #{coatten_forward.2} parent=70 // pred_check
              _
            $region84: #{coatten_forward.2} parent=70 // pred_check_branch
              %364 = sbr.rel target = $region86
            $region85: #{coatten_forward.2} parent=70 // pred_region
              _
            $region86: #{coatten_forward.2} parent=70 // pred_fallthru
              _
          $region71: #{coatten_forward.2} parent=66 // pred_fallthru
            _
          %365 = vnop
        $region67: #{coatten_forward.2} parent=39 // pred_fallthru
          _
        // Predicated region
        $region87: #{coatten_forward.2} parent=39 // pred_check
          %p366 = pneg %p89
        $region88: #{coatten_forward.2} parent=39 // pred_check_branch
          %368 = sbr.rel (%p366) target = $region90
        $region89: #{coatten_forward.2} parent=39 // pred_region
          %s369 = sand.u32 %s79, 1
          %s370 = sand.u32 %s79, 1
          %s371 = smul.addr %s370, 32
          %s372 = scalar_lea.vmem [#allocation6], %s371
          %s373 = smul.u32 4, %s17
          %s374 = smul.addr %s373, 4
          %s375 = scalar_lea.vmem %s2, %s374
          // Predicated region
          $region91: #{coatten_forward.2} parent=89 // pred_check
            _
          $region92: #{coatten_forward.2} parent=89 // pred_check_branch
            %377 = sbr.rel (0) target = $region94
          $region93: #{coatten_forward.2} parent=89 // pred_region
            // Predicated region
            $region95: #{coatten_forward.2} parent=93 // pred_check
              _
            $region96: #{coatten_forward.2} parent=93 // pred_check_branch
              %379 = sbr.rel (0) target = $region98
            $region97: #{coatten_forward.2} parent=93 // pred_region
              loop: start=0, step=1, limit=1
              $region99: #{coatten_forward.2} parent=97 // loop_pre_header
                _
              $region100: #{coatten_forward.2} parent=97 // loop_header
                %s381 = sphi 0, %s385
                %p382 = scmp.ge.s32.totalorder %s381, 1
                %s386 = sphi %s375, %s375
                %s387 = sphi %s372, %s372
              $region101: #{coatten_forward.2} parent=97 // loop_header_branch
                %384 = sbr.rel (%p382) target = $region105
              $region102: #{coatten_forward.2} parent=97 // loop_body
                %v388 = vld [vmem:[%s386] sm:$0xff]
                %389 = vst [vmem:[%s387] sm:$0xff] %v388
                %v390 = vld [vmem:[%s386 + $0x8] sm:$0xff]
                %391 = vst [vmem:[%s387 + $0x8] sm:$0xff] %v390
                %v392 = vld [vmem:[%s386 + $0x40] sm:$0xff]
                %393 = vst [vmem:[%s387 + $0x10] sm:$0xff] %v392
                %v394 = vld [vmem:[%s386 + $0x48] sm:$0xff]
                %395 = vst [vmem:[%s387 + $0x18] sm:$0xff] %v394
              $region103: #{coatten_forward.2} parent=97 // loop_footer
                %s385 = sadd.s32 1, %s381
              $region104: #{coatten_forward.2} parent=97 // loop_footer_branch
                %380 = sbr.rel target = $region100
              $region105: #{coatten_forward.2} parent=97 // loop_exit
                _
            $region98: #{coatten_forward.2} parent=93 // pred_fallthru
              _
            // Predicated region
            $region106: #{coatten_forward.2} parent=93 // pred_check
              _
            $region107: #{coatten_forward.2} parent=93 // pred_check_branch
              %397 = sbr.rel target = $region109
            $region108: #{coatten_forward.2} parent=93 // pred_region
              _
            $region109: #{coatten_forward.2} parent=93 // pred_fallthru
              _
          $region94: #{coatten_forward.2} parent=89 // pred_fallthru
            _
          %398 = vnop
        $region90: #{coatten_forward.2} parent=39 // pred_fallthru
          _
      $region40: #{coatten_forward.2} parent=5 // pred_fallthru
        _
      %p399 = scmp.le.s32.totalorder 1, %s17
      %p400 = scmp.lt.s32.totalorder %s17, 5
      %p401 = pnand %p399, %p400
      %p402 = pneg %p401
      // Predicated region
      $region110: #{coatten_forward.2} parent=5 // pred_check
        _
      $region111: #{coatten_forward.2} parent=5 // pred_check_branch
        %404 = sbr.rel (%p401) target = $region113
      $region112: #{coatten_forward.2} parent=5 // pred_region
        %s405 = ssub.s32 %s17, 1
        %s406 = sand.u32 %s30, 1
        %s407 = sand.u32 %s30, 1
        %s408 = smul.addr %s407, 32
        %s409 = scalar_lea.vmem [#allocation4], %s408
        // Predicated region
        $region114: #{coatten_forward.2} parent=112 // pred_check
          %p410 = pneg %p43
        $region115: #{coatten_forward.2} parent=112 // pred_check_branch
          %412 = sbr.rel (%p410) target = $region117
        $region116: #{coatten_forward.2} parent=112 // pred_region
          _
        $region117: #{coatten_forward.2} parent=112 // pred_fallthru
          _
        %s413 = sand.u32 %s56, 1
        %s414 = sand.u32 %s56, 1
        %s415 = smul.addr %s414, 32
        %s416 = scalar_lea.vmem [#allocation5], %s415
        // Predicated region
        $region118: #{coatten_forward.2} parent=112 // pred_check
          %p417 = pneg %p69
        $region119: #{coatten_forward.2} parent=112 // pred_check_branch
          %419 = sbr.rel (%p417) target = $region121
        $region120: #{coatten_forward.2} parent=112 // pred_region
          _
        $region121: #{coatten_forward.2} parent=112 // pred_fallthru
          _
        %s420 = sand.u32 %s82, 1
        %s421 = sand.u32 %s82, 1
        %s422 = smul.addr %s421, 32
        %s423 = scalar_lea.vmem [#allocation6], %s422
        // Predicated region
        $region122: #{coatten_forward.2} parent=112 // pred_check
          %p424 = pneg %p95
        $region123: #{coatten_forward.2} parent=112 // pred_check_branch
          %426 = sbr.rel (%p424) target = $region125
        $region124: #{coatten_forward.2} parent=112 // pred_region
          _
        $region125: #{coatten_forward.2} parent=112 // pred_fallthru
          _
        %s427 = sand.u32 %s30, 1
        %s428 = sand.u32 %s30, 1
        %s429 = smul.addr %s428, 32
        %s430 = scalar_lea.vmem [#allocation4], %s429
        %p431 = pneg %p43
        %p432 = pneg %p40
        %s433 = sand.u32 %s56, 1
        %s434 = sand.u32 %s56, 1
        %s435 = smul.addr %s434, 32
        %s436 = scalar_lea.vmem [#allocation5], %s435
        %p437 = pneg %p69
        %p438 = pneg %p66
        %s439 = sand.u32 %s82, 1
        %s440 = sand.u32 %s82, 1
        %s441 = smul.addr %s440, 32
        %s442 = scalar_lea.vmem [#allocation6], %s441
        %p443 = pneg %p95
        %p444 = pneg %p92
        %p445 = pneg %p116
        %p446 = pneg %p113
        %p447 = pneg %p137
        %p448 = pneg %p134
        %p449 = pneg %p158
        %p450 = pneg %p155
        %p451 = pneg %p179
        %p452 = pneg %p176
        %p453 = pneg %p200
        %p454 = pneg %p197
        %p455 = pneg %p221
        %p456 = pneg %p218
        %p457 = pneg %p242
        %p458 = pneg %p239
        %p459 = pneg %p263
        %p460 = pneg %p260
        %s461 = smul.u32 4, %s22
        %s462 = smul.u32 4, %s22
        %s463 = smul.u32 4, %s22
        %p465 = scmp.eq.s32.totalorder %s22, 0
        // Predicated region
        $region126: #{coatten_forward.2} parent=112 // pred_check
          %p466 = pneg %p465
        $region127: #{coatten_forward.2} parent=112 // pred_check_branch
          %468 = sbr.rel (%p466) target = $region129
        $region128: #{coatten_forward.2} parent=112 // pred_region
          %vm469 = vcmask 64512
          %470 = vst.msk [vmem:[#allocation2] sm:$0xff] %vm469, 0.0
          %471 = vst.msk [vmem:[#allocation3] sm:$0xff] %vm469, 0.0
        $region129: #{coatten_forward.2} parent=112 // pred_fallthru
          _
        %v472 = vld [vmem:[%s3] sm:$0xf]
        %v473 = vld [vmem:[%s409] sm:$0xff]
        %v474 = vld [vmem:[%s409 + $0x8] sm:$0xff]
        %v475 = vld [vmem:[%s409 + $0x10] sm:$0xff]
        %v476 = vld [vmem:[%s409 + $0x18] sm:$0xff]
        %v477 = vld [vmem:[%s6] sm:$0xff]
        %479 = vset.pattern.permute.xlu0 0
        %480 = vperm.xlu0 %479, %v477
        %v481 = vpop.permute.xlu0 %480
        %v487 = vunpack.c.l.b16 %v473
        %v488 = vunpack.c.h.b16 %v473
        %v489 = vunpack.c.l.b16 %v474
        %v490 = vunpack.c.h.b16 %v474
        %v491 = vunpack.c.l.b16 %v475
        %v492 = vunpack.c.h.b16 %v475
        %v493 = vunpack.c.l.b16 %v476
        %v494 = vunpack.c.h.b16 %v476
        %v495 = vpack.c.b16 %v491, %v487
        %v496 = vpack.c.b16 %v492, %v488
        %v497 = vpack.c.b16 %v493, %v489
        %v498 = vpack.c.b16 %v494, %v490
        %vm503 = vcmask 130048
        %v505 = vsel %vm503, %v472, 0
        %507 = vmatprep.subr.bf16.mxu0 %v496
        %508 = vmatpush1.bf16.msra.mxu0 %v495
        %509 = vmatprep.subr.bf16.mxu0 0
        %510 = vmatpush1.bf16.msra.mxu0 0
        %511 = vmatprep.subr.bf16.mxu0 0
        %512 = vmatpush1.bf16.msra.mxu0 0
        %513 = vmatprep.subr.bf16.mxu0 0
        %514 = vmatpush1.bf16.msra.mxu0 0
        %515 = vmatprep.subr.bf16.mxu0 0
        %516 = vmatpush1.bf16.msra.mxu0 0
        %517 = vmatprep.subr.bf16.mxu0 0
        %518 = vmatpush1.bf16.msra.mxu0 0
        %519 = vmatprep.subr.bf16.mxu0 0
        %520 = vmatpush1.bf16.msra.mxu0 0
        %521 = vmatprep.subr.bf16.mxu0 0
        %522 = vmatpush1.bf16.msra.mxu0 0
        %523 = vmatprep.subr.bf16.mxu0 0
        %524 = vmatpush1.bf16.msra.mxu0 0
        %525 = vmatprep.subr.bf16.mxu0 0
        %526 = vmatpush1.bf16.msra.mxu0 0
        %527 = vmatprep.subr.bf16.mxu0 0
        %528 = vmatpush1.bf16.msra.mxu0 0
        %529 = vmatprep.subr.bf16.mxu0 0
        %530 = vmatpush1.bf16.msra.mxu0 0
        %531 = vmatprep.subr.bf16.mxu0 0
        %532 = vmatpush1.bf16.msra.mxu0 0
        %533 = vmatprep.subr.bf16.mxu0 0
        %534 = vmatpush1.bf16.msra.mxu0 0
        %535 = vmatprep.subr.bf16.mxu0 0
        %536 = vmatpush1.bf16.msra.mxu0 0
        %537 = vmatprep.subr.bf16.mxu0 0
        %538 = vmatpush1.bf16.msra.mxu0 0
        %539 = vmatprep.mubr.bf16.mxu0 0
        %540 = vmatmul.mubr.bf16.gmra.mrb[0].mxu0 %v505
        %v541 = vpop.f32.mrb[0].mxu0
        %v542 = vadd.f32 %v481, %v541
        %v543 = vpop.f32.mrb[0].mxu0
        %v544 = vadd.f32 %v481, %v543
        %v545 = vpop.f32.mrb[0].mxu0
        %v546 = vpop.f32.mrb[0].mxu0
        %547 = vdwg.mxu0
        %548 = vmatprep.subr.bf16.mxu0 %v498
        %549 = vmatpush1.bf16.msra.mxu0 %v497
        %550 = vmatprep.subr.bf16.mxu0 0
        %551 = vmatpush1.bf16.msra.mxu0 0
        %552 = vmatprep.subr.bf16.mxu0 0
        %553 = vmatpush1.bf16.msra.mxu0 0
        %554 = vmatprep.subr.bf16.mxu0 0
        %555 = vmatpush1.bf16.msra.mxu0 0
        %556 = vmatprep.subr.bf16.mxu0 0
        %557 = vmatpush1.bf16.msra.mxu0 0
        %558 = vmatprep.subr.bf16.mxu0 0
        %559 = vmatpush1.bf16.msra.mxu0 0
        %560 = vmatprep.subr.bf16.mxu0 0
        %561 = vmatpush1.bf16.msra.mxu0 0
        %562 = vmatprep.subr.bf16.mxu0 0
        %563 = vmatpush1.bf16.msra.mxu0 0
        %564 = vmatprep.subr.bf16.mxu0 0
        %565 = vmatpush1.bf16.msra.mxu0 0
        %566 = vmatprep.subr.bf16.mxu0 0
        %567 = vmatpush1.bf16.msra.mxu0 0
        %568 = vmatprep.subr.bf16.mxu0 0
        %569 = vmatpush1.bf16.msra.mxu0 0
        %570 = vmatprep.subr.bf16.mxu0 0
        %571 = vmatpush1.bf16.msra.mxu0 0
        %572 = vmatprep.subr.bf16.mxu0 0
        %573 = vmatpush1.bf16.msra.mxu0 0
        %574 = vmatprep.subr.bf16.mxu0 0
        %575 = vmatpush1.bf16.msra.mxu0 0
        %576 = vmatprep.subr.bf16.mxu0 0
        %577 = vmatpush1.bf16.msra.mxu0 0
        %578 = vmatprep.subr.bf16.mxu0 0
        %579 = vmatpush1.bf16.msra.mxu0 0
        %580 = vmatprep.mubr.bf16.mxu0 0
        %581 = vmatmul.mubr.bf16.gmra.mrb[0].mxu0 %v505
        %v582 = vpop.f32.mrb[0].mxu0
        %v583 = vadd.f32 %v481, %v582
        %v584 = vpop.f32.mrb[0].mxu0
        %v585 = vadd.f32 %v481, %v584
        %v586 = vpop.f32.mrb[0].mxu0
        %v587 = vpop.f32.mrb[0].mxu0
        %588 = vdwg.mxu0
        %v589 = vld [vmem:[%s4] sm:$0xf]
        %v590 = vld [vmem:[%s416] sm:$0xff]
        %v591 = vld [vmem:[%s416 + $0x8] sm:$0xff]
        %v592 = vld [vmem:[%s416 + $0x10] sm:$0xff]
        %v593 = vld [vmem:[%s416 + $0x18] sm:$0xff]
        %v594 = vld [vmem:[%s7] sm:$0xff]
        %596 = vset.pattern.permute.xlu0 0
        %597 = vperm.xlu0 %596, %v594
        %v598 = vpop.permute.xlu0 %597
        %v604 = vunpack.c.l.b16 %v590
        %v605 = vunpack.c.h.b16 %v590
        %v606 = vunpack.c.l.b16 %v591
        %v607 = vunpack.c.h.b16 %v591
        %v608 = vunpack.c.l.b16 %v592
        %v609 = vunpack.c.h.b16 %v592
        %v610 = vunpack.c.l.b16 %v593
        %v611 = vunpack.c.h.b16 %v593
        %v612 = vpack.c.b16 %v608, %v604
        %v613 = vpack.c.b16 %v609, %v605
        %v614 = vpack.c.b16 %v610, %v606
        %v615 = vpack.c.b16 %v611, %v607
        %v621 = vsel %vm503, %v589, 0
        %623 = vmatprep.subr.bf16.mxu0 %v613
        %624 = vmatpush1.bf16.msra.mxu0 %v612
        %625 = vmatprep.subr.bf16.mxu0 0
        %626 = vmatpush1.bf16.msra.mxu0 0
        %627 = vmatprep.subr.bf16.mxu0 0
        %628 = vmatpush1.bf16.msra.mxu0 0
        %629 = vmatprep.subr.bf16.mxu0 0
        %630 = vmatpush1.bf16.msra.mxu0 0
        %631 = vmatprep.subr.bf16.mxu0 0
        %632 = vmatpush1.bf16.msra.mxu0 0
        %633 = vmatprep.subr.bf16.mxu0 0
        %634 = vmatpush1.bf16.msra.mxu0 0
        %635 = vmatprep.subr.bf16.mxu0 0
        %636 = vmatpush1.bf16.msra.mxu0 0
        %637 = vmatprep.subr.bf16.mxu0 0
        %638 = vmatpush1.bf16.msra.mxu0 0
        %639 = vmatprep.subr.bf16.mxu0 0
        %640 = vmatpush1.bf16.msra.mxu0 0
        %641 = vmatprep.subr.bf16.mxu0 0
        %642 = vmatpush1.bf16.msra.mxu0 0
        %643 = vmatprep.subr.bf16.mxu0 0
        %644 = vmatpush1.bf16.msra.mxu0 0
        %645 = vmatprep.subr.bf16.mxu0 0
        %646 = vmatpush1.bf16.msra.mxu0 0
        %647 = vmatprep.subr.bf16.mxu0 0
        %648 = vmatpush1.bf16.msra.mxu0 0
        %649 = vmatprep.subr.bf16.mxu0 0
        %650 = vmatpush1.bf16.msra.mxu0 0
        %651 = vmatprep.subr.bf16.mxu0 0
        %652 = vmatpush1.bf16.msra.mxu0 0
        %653 = vmatprep.subr.bf16.mxu0 0
        %654 = vmatpush1.bf16.msra.mxu0 0
        %655 = vmatprep.mubr.bf16.mxu0 0
        %656 = vmatmul.mubr.bf16.gmra.mrb[0].mxu0 %v621
        %v657 = vpop.f32.mrb[0].mxu0
        %v658 = vadd.f32 %v598, %v657
        %v659 = vpop.f32.mrb[0].mxu0
        %v660 = vadd.f32 %v598, %v659
        %v661 = vpop.f32.mrb[0].mxu0
        %v662 = vpop.f32.mrb[0].mxu0
        %663 = vdwg.mxu0
        %664 = vmatprep.subr.bf16.mxu0 %v615
        %665 = vmatpush1.bf16.msra.mxu0 %v614
        %666 = vmatprep.subr.bf16.mxu0 0
        %667 = vmatpush1.bf16.msra.mxu0 0
        %668 = vmatprep.subr.bf16.mxu0 0
        %669 = vmatpush1.bf16.msra.mxu0 0
        %670 = vmatprep.subr.bf16.mxu0 0
        %671 = vmatpush1.bf16.msra.mxu0 0
        %672 = vmatprep.subr.bf16.mxu0 0
        %673 = vmatpush1.bf16.msra.mxu0 0
        %674 = vmatprep.subr.bf16.mxu0 0
        %675 = vmatpush1.bf16.msra.mxu0 0
        %676 = vmatprep.subr.bf16.mxu0 0
        %677 = vmatpush1.bf16.msra.mxu0 0
        %678 = vmatprep.subr.bf16.mxu0 0
        %679 = vmatpush1.bf16.msra.mxu0 0
        %680 = vmatprep.subr.bf16.mxu0 0
        %681 = vmatpush1.bf16.msra.mxu0 0
        %682 = vmatprep.subr.bf16.mxu0 0
        %683 = vmatpush1.bf16.msra.mxu0 0
        %684 = vmatprep.subr.bf16.mxu0 0
        %685 = vmatpush1.bf16.msra.mxu0 0
        %686 = vmatprep.subr.bf16.mxu0 0
        %687 = vmatpush1.bf16.msra.mxu0 0
        %688 = vmatprep.subr.bf16.mxu0 0
        %689 = vmatpush1.bf16.msra.mxu0 0
        %690 = vmatprep.subr.bf16.mxu0 0
        %691 = vmatpush1.bf16.msra.mxu0 0
        %692 = vmatprep.subr.bf16.mxu0 0
        %693 = vmatpush1.bf16.msra.mxu0 0
        %694 = vmatprep.subr.bf16.mxu0 0
        %695 = vmatpush1.bf16.msra.mxu0 0
        %696 = vmatprep.mubr.bf16.mxu0 0
        %697 = vmatmul.mubr.bf16.gmra.mrb[0].mxu0 %v621
        %v698 = vpop.f32.mrb[0].mxu0
        %v699 = vadd.f32 %v598, %v698
        %v700 = vpop.f32.mrb[0].mxu0
        %v701 = vadd.f32 %v598, %v700
        %v702 = vpop.f32.mrb[0].mxu0
        %v703 = vpop.f32.mrb[0].mxu0
        %704 = vdwg.mxu0
        %v705 = vld [vmem:[%s5] sm:$0xf]
        %v706 = vld [vmem:[%s423] sm:$0xff]
        %v707 = vld [vmem:[%s423 + $0x8] sm:$0xff]
        %v708 = vld [vmem:[%s423 + $0x10] sm:$0xff]
        %v709 = vld [vmem:[%s423 + $0x18] sm:$0xff]
        %v710 = vld [vmem:[%s8] sm:$0xff]
        %712 = vset.pattern.permute.xlu0 0
        %713 = vperm.xlu0 %712, %v710
        %v714 = vpop.permute.xlu0 %713
        %v720 = vunpack.c.l.b16 %v706
        %v721 = vunpack.c.h.b16 %v706
        %v722 = vunpack.c.l.b16 %v707
        %v723 = vunpack.c.h.b16 %v707
        %v724 = vunpack.c.l.b16 %v708
        %v725 = vunpack.c.h.b16 %v708
        %v726 = vunpack.c.l.b16 %v709
        %v727 = vunpack.c.h.b16 %v709
        %v728 = vpack.c.b16 %v724, %v720
        %v729 = vpack.c.b16 %v725, %v721
        %v730 = vpack.c.b16 %v726, %v722
        %v731 = vpack.c.b16 %v727, %v723
        %v737 = vsel %vm503, %v705, 0
        %739 = vmatprep.subr.bf16.mxu0 %v729
        %740 = vmatpush1.bf16.msra.mxu0 %v728
        %741 = vmatprep.subr.bf16.mxu0 0
        %742 = vmatpush1.bf16.msra.mxu0 0
        %743 = vmatprep.subr.bf16.mxu0 0
        %744 = vmatpush1.bf16.msra.mxu0 0
        %745 = vmatprep.subr.bf16.mxu0 0
        %746 = vmatpush1.bf16.msra.mxu0 0
        %747 = vmatprep.subr.bf16.mxu0 0
        %748 = vmatpush1.bf16.msra.mxu0 0
        %749 = vmatprep.subr.bf16.mxu0 0
        %750 = vmatpush1.bf16.msra.mxu0 0
        %751 = vmatprep.subr.bf16.mxu0 0
        %752 = vmatpush1.bf16.msra.mxu0 0
        %753 = vmatprep.subr.bf16.mxu0 0
        %754 = vmatpush1.bf16.msra.mxu0 0
        %755 = vmatprep.subr.bf16.mxu0 0
        %756 = vmatpush1.bf16.msra.mxu0 0
        %757 = vmatprep.subr.bf16.mxu0 0
        %758 = vmatpush1.bf16.msra.mxu0 0
        %759 = vmatprep.subr.bf16.mxu0 0
        %760 = vmatpush1.bf16.msra.mxu0 0
        %761 = vmatprep.subr.bf16.mxu0 0
        %762 = vmatpush1.bf16.msra.mxu0 0
        %763 = vmatprep.subr.bf16.mxu0 0
        %764 = vmatpush1.bf16.msra.mxu0 0
        %765 = vmatprep.subr.bf16.mxu0 0
        %766 = vmatpush1.bf16.msra.mxu0 0
        %767 = vmatprep.subr.bf16.mxu0 0
        %768 = vmatpush1.bf16.msra.mxu0 0
        %769 = vmatprep.subr.bf16.mxu0 0
        %770 = vmatpush1.bf16.msra.mxu0 0
        %771 = vmatprep.mubr.bf16.mxu0 0
        %772 = vmatmul.mubr.bf16.gmra.mrb[0].mxu0 %v737
        %v773 = vpop.f32.mrb[0].mxu0
        %v774 = vadd.f32 %v714, %v773
        %v775 = vpop.f32.mrb[0].mxu0
        %v776 = vadd.f32 %v714, %v775
        %v777 = vpop.f32.mrb[0].mxu0
        %v778 = vpop.f32.mrb[0].mxu0
        %779 = vdwg.mxu0
        %780 = vmatprep.subr.bf16.mxu0 %v731
        %781 = vmatpush1.bf16.msra.mxu0 %v730
        %782 = vmatprep.subr.bf16.mxu0 0
        %783 = vmatpush1.bf16.msra.mxu0 0
        %784 = vmatprep.subr.bf16.mxu0 0
        %785 = vmatpush1.bf16.msra.mxu0 0
        %786 = vmatprep.subr.bf16.mxu0 0
        %787 = vmatpush1.bf16.msra.mxu0 0
        %788 = vmatprep.subr.bf16.mxu0 0
        %789 = vmatpush1.bf16.msra.mxu0 0
        %790 = vmatprep.subr.bf16.mxu0 0
        %791 = vmatpush1.bf16.msra.mxu0 0
        %792 = vmatprep.subr.bf16.mxu0 0
        %793 = vmatpush1.bf16.msra.mxu0 0
        %794 = vmatprep.subr.bf16.mxu0 0
        %795 = vmatpush1.bf16.msra.mxu0 0
        %796 = vmatprep.subr.bf16.mxu0 0
        %797 = vmatpush1.bf16.msra.mxu0 0
        %798 = vmatprep.subr.bf16.mxu0 0
        %799 = vmatpush1.bf16.msra.mxu0 0
        %800 = vmatprep.subr.bf16.mxu0 0
        %801 = vmatpush1.bf16.msra.mxu0 0
        %802 = vmatprep.subr.bf16.mxu0 0
        %803 = vmatpush1.bf16.msra.mxu0 0
        %804 = vmatprep.subr.bf16.mxu0 0
        %805 = vmatpush1.bf16.msra.mxu0 0
        %806 = vmatprep.subr.bf16.mxu0 0
        %807 = vmatpush1.bf16.msra.mxu0 0
        %808 = vmatprep.subr.bf16.mxu0 0
        %809 = vmatpush1.bf16.msra.mxu0 0
        %810 = vmatprep.subr.bf16.mxu0 0
        %811 = vmatpush1.bf16.msra.mxu0 0
        %812 = vmatprep.mubr.bf16.mxu0 0
        %813 = vmatmul.mubr.bf16.gmra.mrb[0].mxu0 %v737
        %v814 = vpop.f32.mrb[0].mxu0
        %v815 = vadd.f32 %v714, %v814
        %v816 = vpop.f32.mrb[0].mxu0
        %v817 = vadd.f32 %v714, %v816
        %v818 = vpop.f32.mrb[0].mxu0
        %v819 = vpop.f32.mrb[0].mxu0
        %820 = vdwg.mxu0
        %v821 = vld [vmem:[#allocation2] sm:$0xff]
        %822 = vmatprep.subr.mxu0 %v660
        %823 = vmatpush1.xpose.msra.mxu0 %v658
        %824 = vmatprep.subr.mxu0 0.0
        %825 = vmatpush1.xpose.msra.mxu0 0.0
        %826 = vmatprep.subr.mxu0 0.0
        %827 = vmatpush1.xpose.msra.mxu0 0.0
        %828 = vmatprep.subr.mxu0 0.0
        %829 = vmatpush1.xpose.msra.mxu0 0.0
        %830 = vmatprep.subr.mxu0 0.0
        %831 = vmatpush1.xpose.msra.mxu0 0.0
        %832 = vmatprep.subr.mxu0 0.0
        %833 = vmatpush1.xpose.msra.mxu0 0.0
        %834 = vmatprep.subr.mxu0 0.0
        %835 = vmatpush1.xpose.msra.mxu0 0.0
        %836 = vmatprep.subr.mxu0 0.0
        %837 = vmatpush1.xpose.msra.mxu0 0.0
        %838 = vmatprep.subr.mxu0 0.0
        %839 = vmatpush1.xpose.msra.mxu0 0.0
        %840 = vmatprep.subr.mxu0 0.0
        %841 = vmatpush1.xpose.msra.mxu0 0.0
        %842 = vmatprep.subr.mxu0 0.0
        %843 = vmatpush1.xpose.msra.mxu0 0.0
        %844 = vmatprep.subr.mxu0 0.0
        %845 = vmatpush1.xpose.msra.mxu0 0.0
        %846 = vmatprep.subr.mxu0 0.0
        %847 = vmatpush1.xpose.msra.mxu0 0.0
        %848 = vmatprep.subr.mxu0 0.0
        %849 = vmatpush1.xpose.msra.mxu0 0.0
        %850 = vmatprep.subr.mxu0 0.0
        %851 = vmatpush1.xpose.msra.mxu0 0.0
        %852 = vmatprep.subr.mxu0 0.0
        %853 = vmatpush1.xpose.msra.mxu0 0.0
        %854 = vmatprep.subr.mxu0 0.0
        %855 = vmatpush1.xpose.msra.mxu0 0.0
        %856 = vmatprep.subr.mxu0 0.0
        %857 = vmatpush1.xpose.msra.mxu0 0.0
        %858 = vmatprep.subr.mxu0 0.0
        %859 = vmatpush1.xpose.msra.mxu0 0.0
        %860 = vmatprep.subr.mxu0 0.0
        %861 = vmatpush1.xpose.msra.mxu0 0.0
        %862 = vmatprep.subr.mxu0 0.0
        %863 = vmatpush1.xpose.msra.mxu0 0.0
        %864 = vmatprep.subr.mxu0 0.0
        %865 = vmatpush1.xpose.msra.mxu0 0.0
        %866 = vmatprep.subr.mxu0 0.0
        %867 = vmatpush1.xpose.msra.mxu0 0.0
        %868 = vmatprep.subr.mxu0 0.0
        %869 = vmatpush1.xpose.msra.mxu0 0.0
        %870 = vmatprep.subr.mxu0 0.0
        %871 = vmatpush1.xpose.msra.mxu0 0.0
        %872 = vmatprep.subr.mxu0 0.0
        %873 = vmatpush1.xpose.msra.mxu0 0.0
        %874 = vmatprep.subr.mxu0 0.0
        %875 = vmatpush1.xpose.msra.mxu0 0.0
        %876 = vmatprep.subr.mxu0 0.0
        %877 = vmatpush1.xpose.msra.mxu0 0.0
        %878 = vmatprep.subr.mxu0 0.0
        %879 = vmatpush1.xpose.msra.mxu0 0.0
        %880 = vmatprep.subr.mxu0 0.0
        %881 = vmatpush1.xpose.msra.mxu0 0.0
        %882 = vmatprep.subr.mxu0 0.0
        %883 = vmatpush1.xpose.msra.mxu0 0.0
        %884 = vmatprep.subr.mxu0 0.0
        %885 = vmatpush1.xpose.msra.mxu0 0.0
        %886 = vmatprep.mubr.f32.mxu0 %v544
        %887 = vmatmul.mubr.f32.gmra.mrb[0].mxu0 %v542
        %v888 = vpop.f32.mrb[0].mxu0
        %v889 = vadd.f32 0.0, %v888
        %v890 = vpop.f32.mrb[0].mxu0
        %891 = vdwg.mxu0
        %892 = vmatprep.subr.mxu0 %v701
        %893 = vmatpush1.xpose.msra.mxu0 %v699
        %894 = vmatprep.subr.mxu0 0.0
        %895 = vmatpush1.xpose.msra.mxu0 0.0
        %896 = vmatprep.subr.mxu0 0.0
        %897 = vmatpush1.xpose.msra.mxu0 0.0
        %898 = vmatprep.subr.mxu0 0.0
        %899 = vmatpush1.xpose.msra.mxu0 0.0
        %900 = vmatprep.subr.mxu0 0.0
        %901 = vmatpush1.xpose.msra.mxu0 0.0
        %902 = vmatprep.subr.mxu0 0.0
        %903 = vmatpush1.xpose.msra.mxu0 0.0
        %904 = vmatprep.subr.mxu0 0.0
        %905 = vmatpush1.xpose.msra.mxu0 0.0
        %906 = vmatprep.subr.mxu0 0.0
        %907 = vmatpush1.xpose.msra.mxu0 0.0
        %908 = vmatprep.subr.mxu0 0.0
        %909 = vmatpush1.xpose.msra.mxu0 0.0
        %910 = vmatprep.subr.mxu0 0.0
        %911 = vmatpush1.xpose.msra.mxu0 0.0
        %912 = vmatprep.subr.mxu0 0.0
        %913 = vmatpush1.xpose.msra.mxu0 0.0
        %914 = vmatprep.subr.mxu0 0.0
        %915 = vmatpush1.xpose.msra.mxu0 0.0
        %916 = vmatprep.subr.mxu0 0.0
        %917 = vmatpush1.xpose.msra.mxu0 0.0
        %918 = vmatprep.subr.mxu0 0.0
        %919 = vmatpush1.xpose.msra.mxu0 0.0
        %920 = vmatprep.subr.mxu0 0.0
        %921 = vmatpush1.xpose.msra.mxu0 0.0
        %922 = vmatprep.subr.mxu0 0.0
        %923 = vmatpush1.xpose.msra.mxu0 0.0
        %924 = vmatprep.subr.mxu0 0.0
        %925 = vmatpush1.xpose.msra.mxu0 0.0
        %926 = vmatprep.subr.mxu0 0.0
        %927 = vmatpush1.xpose.msra.mxu0 0.0
        %928 = vmatprep.subr.mxu0 0.0
        %929 = vmatpush1.xpose.msra.mxu0 0.0
        %930 = vmatprep.subr.mxu0 0.0
        %931 = vmatpush1.xpose.msra.mxu0 0.0
        %932 = vmatprep.subr.mxu0 0.0
        %933 = vmatpush1.xpose.msra.mxu0 0.0
        %934 = vmatprep.subr.mxu0 0.0
        %935 = vmatpush1.xpose.msra.mxu0 0.0
        %936 = vmatprep.subr.mxu0 0.0
        %937 = vmatpush1.xpose.msra.mxu0 0.0
        %938 = vmatprep.subr.mxu0 0.0
        %939 = vmatpush1.xpose.msra.mxu0 0.0
        %940 = vmatprep.subr.mxu0 0.0
        %941 = vmatpush1.xpose.msra.mxu0 0.0
        %942 = vmatprep.subr.mxu0 0.0
        %943 = vmatpush1.xpose.msra.mxu0 0.0
        %944 = vmatprep.subr.mxu0 0.0
        %945 = vmatpush1.xpose.msra.mxu0 0.0
        %946 = vmatprep.subr.mxu0 0.0
        %947 = vmatpush1.xpose.msra.mxu0 0.0
        %948 = vmatprep.subr.mxu0 0.0
        %949 = vmatpush1.xpose.msra.mxu0 0.0
        %950 = vmatprep.subr.mxu0 0.0
        %951 = vmatpush1.xpose.msra.mxu0 0.0
        %952 = vmatprep.subr.mxu0 0.0
        %953 = vmatpush1.xpose.msra.mxu0 0.0
        %954 = vmatprep.subr.mxu0 0.0
        %955 = vmatpush1.xpose.msra.mxu0 0.0
        %956 = vmatprep.mubr.f32.mxu0 %v585
        %957 = vmatmul.mubr.f32.gmra.mrb[0].mxu0 %v583
        %v958 = vpop.f32.mrb[0].mxu0
        %v959 = vadd.f32 %v889, %v958
        %v960 = vpop.f32.mrb[0].mxu0
        %961 = vdwg.mxu0
        %v962 = vadd.f32 %v821, %v959
        %vm963 = vcmask 64512
        %964 = vst.msk [vmem:[#allocation2] sm:$0xff] %vm963, %v962
        %v965 = vld [vmem:[#allocation3] sm:$0xff]
        %966 = vmatprep.subr.mxu0 %v776
        %967 = vmatpush1.xpose.msra.mxu0 %v774
        %968 = vmatprep.subr.mxu0 0.0
        %969 = vmatpush1.xpose.msra.mxu0 0.0
        %970 = vmatprep.subr.mxu0 0.0
        %971 = vmatpush1.xpose.msra.mxu0 0.0
        %972 = vmatprep.subr.mxu0 0.0
        %973 = vmatpush1.xpose.msra.mxu0 0.0
        %974 = vmatprep.subr.mxu0 0.0
        %975 = vmatpush1.xpose.msra.mxu0 0.0
        %976 = vmatprep.subr.mxu0 0.0
        %977 = vmatpush1.xpose.msra.mxu0 0.0
        %978 = vmatprep.subr.mxu0 0.0
        %979 = vmatpush1.xpose.msra.mxu0 0.0
        %980 = vmatprep.subr.mxu0 0.0
        %981 = vmatpush1.xpose.msra.mxu0 0.0
        %982 = vmatprep.subr.mxu0 0.0
        %983 = vmatpush1.xpose.msra.mxu0 0.0
        %984 = vmatprep.subr.mxu0 0.0
        %985 = vmatpush1.xpose.msra.mxu0 0.0
        %986 = vmatprep.subr.mxu0 0.0
        %987 = vmatpush1.xpose.msra.mxu0 0.0
        %988 = vmatprep.subr.mxu0 0.0
        %989 = vmatpush1.xpose.msra.mxu0 0.0
        %990 = vmatprep.subr.mxu0 0.0
        %991 = vmatpush1.xpose.msra.mxu0 0.0
        %992 = vmatprep.subr.mxu0 0.0
        %993 = vmatpush1.xpose.msra.mxu0 0.0
        %994 = vmatprep.subr.mxu0 0.0
        %995 = vmatpush1.xpose.msra.mxu0 0.0
        %996 = vmatprep.subr.mxu0 0.0
        %997 = vmatpush1.xpose.msra.mxu0 0.0
        %998 = vmatprep.subr.mxu0 0.0
        %999 = vmatpush1.xpose.msra.mxu0 0.0
        %1000 = vmatprep.subr.mxu0 0.0
        %1001 = vmatpush1.xpose.msra.mxu0 0.0
        %1002 = vmatprep.subr.mxu0 0.0
        %1003 = vmatpush1.xpose.msra.mxu0 0.0
        %1004 = vmatprep.subr.mxu0 0.0
        %1005 = vmatpush1.xpose.msra.mxu0 0.0
        %1006 = vmatprep.subr.mxu0 0.0
        %1007 = vmatpush1.xpose.msra.mxu0 0.0
        %1008 = vmatprep.subr.mxu0 0.0
        %1009 = vmatpush1.xpose.msra.mxu0 0.0
        %1010 = vmatprep.subr.mxu0 0.0
        %1011 = vmatpush1.xpose.msra.mxu0 0.0
        %1012 = vmatprep.subr.mxu0 0.0
        %1013 = vmatpush1.xpose.msra.mxu0 0.0
        %1014 = vmatprep.subr.mxu0 0.0
        %1015 = vmatpush1.xpose.msra.mxu0 0.0
        %1016 = vmatprep.subr.mxu0 0.0
        %1017 = vmatpush1.xpose.msra.mxu0 0.0
        %1018 = vmatprep.subr.mxu0 0.0
        %1019 = vmatpush1.xpose.msra.mxu0 0.0
        %1020 = vmatprep.subr.mxu0 0.0
        %1021 = vmatpush1.xpose.msra.mxu0 0.0
        %1022 = vmatprep.subr.mxu0 0.0
        %1023 = vmatpush1.xpose.msra.mxu0 0.0
        %1024 = vmatprep.subr.mxu0 0.0
        %1025 = vmatpush1.xpose.msra.mxu0 0.0
        %1026 = vmatprep.subr.mxu0 0.0
        %1027 = vmatpush1.xpose.msra.mxu0 0.0
        %1028 = vmatprep.subr.mxu0 0.0
        %1029 = vmatpush1.xpose.msra.mxu0 0.0
        %1030 = vmatprep.mubr.f32.mxu0 %v544
        %1031 = vmatmul.mubr.f32.gmra.mrb[0].mxu0 %v542
        %v1032 = vpop.f32.mrb[0].mxu0
        %v1033 = vadd.f32 0.0, %v1032
        %v1034 = vpop.f32.mrb[0].mxu0
        %1035 = vdwg.mxu0
        %1036 = vmatprep.subr.mxu0 %v817
        %1037 = vmatpush1.xpose.msra.mxu0 %v815
        %1038 = vmatprep.subr.mxu0 0.0
        %1039 = vmatpush1.xpose.msra.mxu0 0.0
        %1040 = vmatprep.subr.mxu0 0.0
        %1041 = vmatpush1.xpose.msra.mxu0 0.0
        %1042 = vmatprep.subr.mxu0 0.0
        %1043 = vmatpush1.xpose.msra.mxu0 0.0
        %1044 = vmatprep.subr.mxu0 0.0
        %1045 = vmatpush1.xpose.msra.mxu0 0.0
        %1046 = vmatprep.subr.mxu0 0.0
        %1047 = vmatpush1.xpose.msra.mxu0 0.0
        %1048 = vmatprep.subr.mxu0 0.0
        %1049 = vmatpush1.xpose.msra.mxu0 0.0
        %1050 = vmatprep.subr.mxu0 0.0
        %1051 = vmatpush1.xpose.msra.mxu0 0.0
        %1052 = vmatprep.subr.mxu0 0.0
        %1053 = vmatpush1.xpose.msra.mxu0 0.0
        %1054 = vmatprep.subr.mxu0 0.0
        %1055 = vmatpush1.xpose.msra.mxu0 0.0
        %1056 = vmatprep.subr.mxu0 0.0
        %1057 = vmatpush1.xpose.msra.mxu0 0.0
        %1058 = vmatprep.subr.mxu0 0.0
        %1059 = vmatpush1.xpose.msra.mxu0 0.0
        %1060 = vmatprep.subr.mxu0 0.0
        %1061 = vmatpush1.xpose.msra.mxu0 0.0
        %1062 = vmatprep.subr.mxu0 0.0
        %1063 = vmatpush1.xpose.msra.mxu0 0.0
        %1064 = vmatprep.subr.mxu0 0.0
        %1065 = vmatpush1.xpose.msra.mxu0 0.0
        %1066 = vmatprep.subr.mxu0 0.0
        %1067 = vmatpush1.xpose.msra.mxu0 0.0
        %1068 = vmatprep.subr.mxu0 0.0
        %1069 = vmatpush1.xpose.msra.mxu0 0.0
        %1070 = vmatprep.subr.mxu0 0.0
        %1071 = vmatpush1.xpose.msra.mxu0 0.0
        %1072 = vmatprep.subr.mxu0 0.0
        %1073 = vmatpush1.xpose.msra.mxu0 0.0
        %1074 = vmatprep.subr.mxu0 0.0
        %1075 = vmatpush1.xpose.msra.mxu0 0.0
        %1076 = vmatprep.subr.mxu0 0.0
        %1077 = vmatpush1.xpose.msra.mxu0 0.0
        %1078 = vmatprep.subr.mxu0 0.0
        %1079 = vmatpush1.xpose.msra.mxu0 0.0
        %1080 = vmatprep.subr.mxu0 0.0
        %1081 = vmatpush1.xpose.msra.mxu0 0.0
        %1082 = vmatprep.subr.mxu0 0.0
        %1083 = vmatpush1.xpose.msra.mxu0 0.0
        %1084 = vmatprep.subr.mxu0 0.0
        %1085 = vmatpush1.xpose.msra.mxu0 0.0
        %1086 = vmatprep.subr.mxu0 0.0
        %1087 = vmatpush1.xpose.msra.mxu0 0.0
        %1088 = vmatprep.subr.mxu0 0.0
        %1089 = vmatpush1.xpose.msra.mxu0 0.0
        %1090 = vmatprep.subr.mxu0 0.0
        %1091 = vmatpush1.xpose.msra.mxu0 0.0
        %1092 = vmatprep.subr.mxu0 0.0
        %1093 = vmatpush1.xpose.msra.mxu0 0.0
        %1094 = vmatprep.subr.mxu0 0.0
        %1095 = vmatpush1.xpose.msra.mxu0 0.0
        %1096 = vmatprep.subr.mxu0 0.0
        %1097 = vmatpush1.xpose.msra.mxu0 0.0
        %1098 = vmatprep.subr.mxu0 0.0
        %1099 = vmatpush1.xpose.msra.mxu0 0.0
        %1100 = vmatprep.mubr.f32.mxu0 %v585
        %1101 = vmatmul.mubr.f32.gmra.mrb[0].mxu0 %v583
        %v1102 = vpop.f32.mrb[0].mxu0
        %v1103 = vadd.f32 %v1033, %v1102
        %v1104 = vpop.f32.mrb[0].mxu0
        %1105 = vdwg.mxu0
        %v1106 = vadd.f32 %v965, %v1103
        %1107 = vst.msk [vmem:[#allocation3] sm:$0xff] %vm963, %v1106
        %p1108 = scmp.eq.s32.totalorder %s22, 3
        // Predicated region
        $region130: #{coatten_forward.2} parent=112 // pred_check
          %p1109 = pneg %p1108
        $region131: #{coatten_forward.2} parent=112 // pred_check_branch
          %1111 = sbr.rel (%p1109) target = $region133
        $region132: #{coatten_forward.2} parent=112 // pred_region
          %v1112 = vld [vmem:[#allocation2] sm:$0xff]
          %v1113 = vsel %vm963, %v1112, -inf
          %1114 = vmax.xlane.f32.xlu0 %v1113
          %v1115 = vpop.xlane.xlu0 %1114
          %v1116 = vsub.f32 %v1112, %v1115
          %v1117 = vmul.f32 %v1116, 1.442695
          %v1118 = vpow.pop %v1117
          %v1119 = vsel %vm963, %v1118, 0.0
          %1120 = vadd.xlane.f32.xlu0 %v1119
          %v1121 = vpop.xlane.xlu0 %1120
          %v1122 = vrcp.pop %v1121
          %v1123 = vmul.f32 %v1118, %v1122
          %1124 = vst.msk [vmem:[%s9] sm:$0xff] %vm963, %v1123
          %v1125 = vld [vmem:[#allocation3] sm:$0xff]
          %v1126 = vsel %vm963, %v1125, -inf
          %1127 = vmax.xlane.f32.xlu0 %v1126
          %v1128 = vpop.xlane.xlu0 %1127
          %v1129 = vsub.f32 %v1125, %v1128
          %v1130 = vmul.f32 %v1129, 1.442695
          %v1131 = vpow.pop %v1130
          %v1132 = vsel %vm963, %v1131, 0.0
          %1133 = vadd.xlane.f32.xlu0 %v1132
          %v1134 = vpop.xlane.xlu0 %1133
          %v1135 = vrcp.pop %v1134
          %v1136 = vmul.f32 %v1131, %v1135
          %1137 = vst.msk [vmem:[%s10] sm:$0xff] %vm963, %v1136
        $region133: #{coatten_forward.2} parent=112 // pred_fallthru
          _
        // Predicated region
        $region134: #{coatten_forward.2} parent=112 // pred_check
          %p1138 = pneg %p239
        $region135: #{coatten_forward.2} parent=112 // pred_check_branch
          %1140 = sbr.rel (%p1138) target = $region137
        $region136: #{coatten_forward.2} parent=112 // pred_region
          _
        $region137: #{coatten_forward.2} parent=112 // pred_fallthru
          _
        // Predicated region
        $region138: #{coatten_forward.2} parent=112 // pred_check
          %p1141 = pneg %p260
        $region139: #{coatten_forward.2} parent=112 // pred_check_branch
          %1143 = sbr.rel (%p1141) target = $region141
        $region140: #{coatten_forward.2} parent=112 // pred_region
          _
        $region141: #{coatten_forward.2} parent=112 // pred_fallthru
          _
        // Predicated region
        $region142: #{coatten_forward.2} parent=112 // pred_check
          %p1144 = pneg %p239
        $region143: #{coatten_forward.2} parent=112 // pred_check_branch
          %1146 = sbr.rel (%p1144) target = $region145
        $region144: #{coatten_forward.2} parent=112 // pred_region
          _
        $region145: #{coatten_forward.2} parent=112 // pred_fallthru
          _
        // Predicated region
        $region146: #{coatten_forward.2} parent=112 // pred_check
          %p1147 = pneg %p260
        $region147: #{coatten_forward.2} parent=112 // pred_check_branch
          %1149 = sbr.rel (%p1147) target = $region149
        $region148: #{coatten_forward.2} parent=112 // pred_region
          _
        $region149: #{coatten_forward.2} parent=112 // pred_fallthru
          _
      $region113: #{coatten_forward.2} parent=5 // pred_fallthru
        _
      %p1150 = scmp.le.s32.totalorder 2, %s17
      // Predicated region
      $region150: #{coatten_forward.2} parent=5 // pred_check
        %p1151 = pneg %p1150
      $region151: #{coatten_forward.2} parent=5 // pred_check_branch
        %1153 = sbr.rel (%p1151) target = $region153
      $region152: #{coatten_forward.2} parent=5 // pred_region
        %s1154 = ssub.s32 %s17, 2
      $region153: #{coatten_forward.2} parent=5 // pred_fallthru
        _
    $region6: #{coatten_forward.2} parent=1 // loop_footer
      %s21 = sadd.s32 1, %s17
    $region7: #{coatten_forward.2} parent=1 // loop_footer_branch
      %16 = sbr.rel target = $region3
    $region8: #{coatten_forward.2} parent=1 // loop_exit
      _

// kernel: coatten_forward.3
$region0: #{coatten_forward.3}
  #allocation0 [shape = 'u32[]', space=smem, size = 0x4, offset = 0x4, fixed_abs, tag = 'smem constant byte address 0x4 - core index']
  #allocation1 [shape = 'u32[144,128]{1,0:T(1,128)}', space=vmem, size = 0x12000, scoped, tag = 'internal scratch']
  %s0 = inlined_call_operand.vmem [shape: f32[8,8], index: 0, kind: input, shape index: {}]
  %s1 = inlined_call_operand.vmem [shape: f32[8,8], index: 1, kind: input, shape index: {}]
  %s2 = inlined_call_operand.vmem [shape: bf16[8,8], index: 2, kind: input, shape index: {}]
  %s3 = inlined_call_operand.vmem [shape: bf16[8,8], index: 3, kind: input, shape index: {}]
  %s4 = inlined_call_operand.vmem [shape: f32[8,1], index: 4, kind: input, shape index: {}]
  %s5 = inlined_call_operand.vmem [shape: f32[8,1], index: 5, kind: input, shape index: {}]
  %s6 = inlined_call_operand.vmem [shape: bf16[8,4096], index: 6, kind: input, shape index: {}]
  %s7 = inlined_call_operand.vmem [shape: bf16[8,4096], index: 7, kind: input, shape index: {}]
  %s8 = inlined_call_operand.vmem [shape: f32[8,4096], index: 8, kind: input, shape index: {}]
  %s9 = inlined_call_operand.vmem [shape: f32[8,4096], index: 9, kind: output, shape index: {}]
  %s10 = sld [smem:[#allocation0]]
  $region69: #{coatten_forward.3} parent=0
    _
  %s12 = ssub.s32 1, %s10
  %s13 = scalar_select 0, %s12, %s10
  loop: start=0, step=1, limit=6
  $region2: #{coatten_forward.3} parent=0 // loop_pre_header
    _
  $region3: #{coatten_forward.3} parent=0 // loop_header
    %s15 = sphi 0, %s19
    %p16 = scmp.ge.s32.totalorder %s15, 6
    %s23 = sphi 0, %s23
    %s25 = sphi 0, %s23
    %s26 = sphi 0, %s25
    %s40 = sphi 0, %s26
    %s44 = sphi 0, %s44
    %s46 = sphi 0, %s44
    %s47 = sphi 0, %s46
    %s61 = sphi 0, %s47
    %s65 = sphi 0, %s65
    %s67 = sphi 0, %s65
    %s68 = sphi 0, %s67
    %s82 = sphi 0, %s68
    %s86 = sphi 0, %s86
    %s88 = sphi 0, %s86
    %s89 = sphi 0, %s88
    %s103 = sphi 0, %s89
    %s107 = sphi 0, %s107
    %s109 = sphi 0, %s107
    %s110 = sphi 0, %s109
    %s124 = sphi 0, %s110
    %s128 = sphi 0, %s128
    %s130 = sphi 0, %s128
    %s131 = sphi 0, %s130
    %s145 = sphi 0, %s131
    %s151 = sphi 0, %s153
    %s154 = sphi 0, %s151
    %s155 = sphi 0, %s154
    %s171 = sphi 0, %s155
    %s177 = sphi 0, %s179
    %s180 = sphi 0, %s177
    %s181 = sphi 0, %s180
    %s197 = sphi 0, %s181
    %s203 = sphi 0, %s205
    %s206 = sphi 0, %s203
    %s207 = sphi 0, %s206
    %s223 = sphi 0, %s207
    %s229 = sphi 0, %s231
    %s232 = sphi 0, %s229
    %s233 = sphi 0, %s232
    %s249 = sphi 0, %s233
  $region4: #{coatten_forward.3} parent=0 // loop_header_branch
    %18 = sbr.rel (%p16) target = $region8
  $region5: #{coatten_forward.3} parent=0 // loop_body
    %s20 = ssub.s32 %s15, 1
    %s21 = ssub.s32 %s15, 2
    %s22 = sadd.s32 %s15, 1
    %s24 = sadd.s32 %s23, 1
    %p27 = scmp.eq.s32.totalorder %s15, 3
    %p28 = scmp.ne.s32.totalorder %s23, %s25
    %p29 = scmp.eq.s32.totalorder %s15, 0
    %p30 = por %p28, %p29
    %p31 = scmp.ne.s32.totalorder %s23, %s25
    %p32 = scmp.eq.s32.totalorder %s20, 3
    %p33 = por %p31, %p32
    %p34 = scmp.ne.s32.totalorder %s25, %s26
    %p35 = scmp.eq.s32.totalorder %s20, 0
    %p36 = por %p34, %p35
    %p37 = scmp.ne.s32.totalorder %s25, %s26
    %p38 = scmp.eq.s32.totalorder %s21, 3
    %p39 = por %p37, %p38
    %p41 = scmp.ne.s32.totalorder %s26, %s40
    %p42 = scmp.eq.s32.totalorder %s21, 0
    %p43 = por %p41, %p42
    %s45 = sadd.s32 %s44, 1
    %p48 = scmp.eq.s32.totalorder %s15, 3
    %p49 = scmp.ne.s32.totalorder %s44, %s46
    %p50 = scmp.eq.s32.totalorder %s15, 0
    %p51 = por %p49, %p50
    %p52 = scmp.ne.s32.totalorder %s44, %s46
    %p53 = scmp.eq.s32.totalorder %s20, 3
    %p54 = por %p52, %p53
    %p55 = scmp.ne.s32.totalorder %s46, %s47
    %p56 = scmp.eq.s32.totalorder %s20, 0
    %p57 = por %p55, %p56
    %p58 = scmp.ne.s32.totalorder %s46, %s47
    %p59 = scmp.eq.s32.totalorder %s21, 3
    %p60 = por %p58, %p59
    %p62 = scmp.ne.s32.totalorder %s47, %s61
    %p63 = scmp.eq.s32.totalorder %s21, 0
    %p64 = por %p62, %p63
    %s66 = sadd.s32 %s65, 1
    %p69 = scmp.eq.s32.totalorder %s15, 3
    %p70 = scmp.ne.s32.totalorder %s65, %s67
    %p71 = scmp.eq.s32.totalorder %s15, 0
    %p72 = por %p70, %p71
    %p73 = scmp.ne.s32.totalorder %s65, %s67
    %p74 = scmp.eq.s32.totalorder %s20, 3
    %p75 = por %p73, %p74
    %p76 = scmp.ne.s32.totalorder %s67, %s68
    %p77 = scmp.eq.s32.totalorder %s20, 0
    %p78 = por %p76, %p77
    %p79 = scmp.ne.s32.totalorder %s67, %s68
    %p80 = scmp.eq.s32.totalorder %s21, 3
    %p81 = por %p79, %p80
    %p83 = scmp.ne.s32.totalorder %s68, %s82
    %p84 = scmp.eq.s32.totalorder %s21, 0
    %p85 = por %p83, %p84
    %s87 = sadd.s32 %s86, 1
    %p90 = scmp.eq.s32.totalorder %s15, 3
    %p91 = scmp.ne.s32.totalorder %s86, %s88
    %p92 = scmp.eq.s32.totalorder %s15, 0
    %p93 = por %p91, %p92
    %p94 = scmp.ne.s32.totalorder %s86, %s88
    %p95 = scmp.eq.s32.totalorder %s20, 3
    %p96 = por %p94, %p95
    %p97 = scmp.ne.s32.totalorder %s88, %s89
    %p98 = scmp.eq.s32.totalorder %s20, 0
    %p99 = por %p97, %p98
    %p100 = scmp.ne.s32.totalorder %s88, %s89
    %p101 = scmp.eq.s32.totalorder %s21, 3
    %p102 = por %p100, %p101
    %p104 = scmp.ne.s32.totalorder %s89, %s103
    %p105 = scmp.eq.s32.totalorder %s21, 0
    %p106 = por %p104, %p105
    %s108 = sadd.s32 %s107, 1
    %p111 = scmp.eq.s32.totalorder %s15, 3
    %p112 = scmp.ne.s32.totalorder %s107, %s109
    %p113 = scmp.eq.s32.totalorder %s15, 0
    %p114 = por %p112, %p113
    %p115 = scmp.ne.s32.totalorder %s107, %s109
    %p116 = scmp.eq.s32.totalorder %s20, 3
    %p117 = por %p115, %p116
    %p118 = scmp.ne.s32.totalorder %s109, %s110
    %p119 = scmp.eq.s32.totalorder %s20, 0
    %p120 = por %p118, %p119
    %p121 = scmp.ne.s32.totalorder %s109, %s110
    %p122 = scmp.eq.s32.totalorder %s21, 3
    %p123 = por %p121, %p122
    %p125 = scmp.ne.s32.totalorder %s110, %s124
    %p126 = scmp.eq.s32.totalorder %s21, 0
    %p127 = por %p125, %p126
    %s129 = sadd.s32 %s128, 1
    %p132 = scmp.eq.s32.totalorder %s15, 3
    %p133 = scmp.ne.s32.totalorder %s128, %s130
    %p134 = scmp.eq.s32.totalorder %s15, 0
    %p135 = por %p133, %p134
    %p136 = scmp.ne.s32.totalorder %s128, %s130
    %p137 = scmp.eq.s32.totalorder %s20, 3
    %p138 = por %p136, %p137
    %p139 = scmp.ne.s32.totalorder %s130, %s131
    %p140 = scmp.eq.s32.totalorder %s20, 0
    %p141 = por %p139, %p140
    %p142 = scmp.ne.s32.totalorder %s130, %s131
    %p143 = scmp.eq.s32.totalorder %s21, 3
    %p144 = por %p142, %p143
    %p146 = scmp.ne.s32.totalorder %s131, %s145
    %p147 = scmp.eq.s32.totalorder %s21, 0
    %p148 = por %p146, %p147
    %s149 = ssub.s32 %s15, %s22
    %p150 = scmp.eq.s32.totalorder %s149, 0
    %s152 = sadd.s32 %s151, 1
    %s153 = scalar_select %p150, %s151, %s152
    %p156 = pneg %p150
    %p157 = scmp.eq.s32.totalorder %s15, 3
    %p158 = por %p156, %p157
    %p159 = scmp.ne.s32.totalorder %s151, %s154
    %p160 = scmp.eq.s32.totalorder %s15, 0
    %p161 = por %p159, %p160
    %p162 = scmp.ne.s32.totalorder %s151, %s154
    %p163 = scmp.eq.s32.totalorder %s20, 3
    %p164 = por %p162, %p163
    %p165 = scmp.ne.s32.totalorder %s154, %s155
    %p166 = scmp.eq.s32.totalorder %s20, 0
    %p167 = por %p165, %p166
    %p168 = scmp.ne.s32.totalorder %s154, %s155
    %p169 = scmp.eq.s32.totalorder %s21, 3
    %p170 = por %p168, %p169
    %p172 = scmp.ne.s32.totalorder %s155, %s171
    %p173 = scmp.eq.s32.totalorder %s21, 0
    %p174 = por %p172, %p173
    %s175 = ssub.s32 %s15, %s22
    %p176 = scmp.eq.s32.totalorder %s175, 0
    %s178 = sadd.s32 %s177, 1
    %s179 = scalar_select %p176, %s177, %s178
    %p182 = pneg %p176
    %p183 = scmp.eq.s32.totalorder %s15, 3
    %p184 = por %p182, %p183
    %p185 = scmp.ne.s32.totalorder %s177, %s180
    %p186 = scmp.eq.s32.totalorder %s15, 0
    %p187 = por %p185, %p186
    %p188 = scmp.ne.s32.totalorder %s177, %s180
    %p189 = scmp.eq.s32.totalorder %s20, 3
    %p190 = por %p188, %p189
    %p191 = scmp.ne.s32.totalorder %s180, %s181
    %p192 = scmp.eq.s32.totalorder %s20, 0
    %p193 = por %p191, %p192
    %p194 = scmp.ne.s32.totalorder %s180, %s181
    %p195 = scmp.eq.s32.totalorder %s21, 3
    %p196 = por %p194, %p195
    %p198 = scmp.ne.s32.totalorder %s181, %s197
    %p199 = scmp.eq.s32.totalorder %s21, 0
    %p200 = por %p198, %p199
    %s201 = ssub.s32 %s15, %s22
    %p202 = scmp.eq.s32.totalorder %s201, 0
    %s204 = sadd.s32 %s203, 1
    %s205 = scalar_select %p202, %s203, %s204
    %p208 = pneg %p202
    %p209 = scmp.eq.s32.totalorder %s15, 3
    %p210 = por %p208, %p209
    %p211 = scmp.ne.s32.totalorder %s203, %s206
    %p212 = scmp.eq.s32.totalorder %s15, 0
    %p213 = por %p211, %p212
    %p214 = scmp.ne.s32.totalorder %s203, %s206
    %p215 = scmp.eq.s32.totalorder %s20, 3
    %p216 = por %p214, %p215
    %p217 = scmp.ne.s32.totalorder %s206, %s207
    %p218 = scmp.eq.s32.totalorder %s20, 0
    %p219 = por %p217, %p218
    %p220 = scmp.ne.s32.totalorder %s206, %s207
    %p221 = scmp.eq.s32.totalorder %s21, 3
    %p222 = por %p220, %p221
    %p224 = scmp.ne.s32.totalorder %s207, %s223
    %p225 = scmp.eq.s32.totalorder %s21, 0
    %p226 = por %p224, %p225
    %s227 = ssub.s32 %s15, %s22
    %p228 = scmp.eq.s32.totalorder %s227, 0
    %s230 = sadd.s32 %s229, 1
    %s231 = scalar_select %p228, %s229, %s230
    %p234 = pneg %p228
    %p235 = scmp.eq.s32.totalorder %s15, 3
    %p236 = por %p234, %p235
    %p237 = scmp.ne.s32.totalorder %s229, %s232
    %p238 = scmp.eq.s32.totalorder %s15, 0
    %p239 = por %p237, %p238
    %p240 = scmp.ne.s32.totalorder %s229, %s232
    %p241 = scmp.eq.s32.totalorder %s20, 3
    %p242 = por %p240, %p241
    %p243 = scmp.ne.s32.totalorder %s232, %s233
    %p244 = scmp.eq.s32.totalorder %s20, 0
    %p245 = por %p243, %p244
    %p246 = scmp.ne.s32.totalorder %s232, %s233
    %p247 = scmp.eq.s32.totalorder %s21, 3
    %p248 = por %p246, %p247
    %p250 = scmp.ne.s32.totalorder %s233, %s249
    %p251 = scmp.eq.s32.totalorder %s21, 0
    %p252 = por %p250, %p251
    %p253 = scmp.le.s32.totalorder 1, %s15
    %p254 = scmp.lt.s32.totalorder %s15, 5
    %p255 = pnand %p253, %p254
    %p256 = pneg %p255
    // Predicated region
    $region9: #{coatten_forward.3} parent=5 // pred_check
      _
    $region10: #{coatten_forward.3} parent=5 // pred_check_branch
      %258 = sbr.rel (%p255) target = $region12
    $region11: #{coatten_forward.3} parent=5 // pred_region
      %s259 = ssub.s32 %s15, 1
      // Predicated region
      $region13: #{coatten_forward.3} parent=11 // pred_check
        %p260 = pneg %p36
      $region14: #{coatten_forward.3} parent=11 // pred_check_branch
        %262 = sbr.rel (%p260) target = $region16
      $region15: #{coatten_forward.3} parent=11 // pred_region
        _
      $region16: #{coatten_forward.3} parent=11 // pred_fallthru
        _
      // Predicated region
      $region17: #{coatten_forward.3} parent=11 // pred_check
        %p263 = pneg %p57
      $region18: #{coatten_forward.3} parent=11 // pred_check_branch
        %265 = sbr.rel (%p263) target = $region20
      $region19: #{coatten_forward.3} parent=11 // pred_region
        _
      $region20: #{coatten_forward.3} parent=11 // pred_fallthru
        _
      // Predicated region
      $region21: #{coatten_forward.3} parent=11 // pred_check
        %p266 = pneg %p78
      $region22: #{coatten_forward.3} parent=11 // pred_check_branch
        %268 = sbr.rel (%p266) target = $region24
      $region23: #{coatten_forward.3} parent=11 // pred_region
        _
      $region24: #{coatten_forward.3} parent=11 // pred_fallthru
        _
      // Predicated region
      $region25: #{coatten_forward.3} parent=11 // pred_check
        %p269 = pneg %p99
      $region26: #{coatten_forward.3} parent=11 // pred_check_branch
        %271 = sbr.rel (%p269) target = $region28
      $region27: #{coatten_forward.3} parent=11 // pred_region
        _
      $region28: #{coatten_forward.3} parent=11 // pred_fallthru
        _
      // Predicated region
      $region29: #{coatten_forward.3} parent=11 // pred_check
        %p272 = pneg %p120
      $region30: #{coatten_forward.3} parent=11 // pred_check_branch
        %274 = sbr.rel (%p272) target = $region32
      $region31: #{coatten_forward.3} parent=11 // pred_region
        _
      $region32: #{coatten_forward.3} parent=11 // pred_fallthru
        _
      // Predicated region
      $region33: #{coatten_forward.3} parent=11 // pred_check
        %p275 = pneg %p141
      $region34: #{coatten_forward.3} parent=11 // pred_check_branch
        %277 = sbr.rel (%p275) target = $region36
      $region35: #{coatten_forward.3} parent=11 // pred_region
        _
      $region36: #{coatten_forward.3} parent=11 // pred_fallthru
        _
    $region12: #{coatten_forward.3} parent=5 // pred_fallthru
      _
    %p278 = scmp.lt.s32.totalorder %s15, 4
    // Predicated region
    $region37: #{coatten_forward.3} parent=5 // pred_check
      %p279 = pneg %p278
    $region38: #{coatten_forward.3} parent=5 // pred_check_branch
      %281 = sbr.rel (%p279) target = $region40
    $region39: #{coatten_forward.3} parent=5 // pred_region
      // Predicated region
      $region41: #{coatten_forward.3} parent=39 // pred_check
        %p282 = pneg %p161
      $region42: #{coatten_forward.3} parent=39 // pred_check_branch
        %284 = sbr.rel (%p282) target = $region44
      $region43: #{coatten_forward.3} parent=39 // pred_region
        %s285 = smul.u32 8, %s15
        %p286 = scmp.lt.s32.totalorder %s285, 31
        %s287 = scalar_select %p286, %s285, 31
        %s288 = smul.addr %s287, 4
        %s289 = scalar_lea.vmem %s6, %s288
        %s290 = smul.u32 8, %s15
      $region44: #{coatten_forward.3} parent=39 // pred_fallthru
        _
      // Predicated region
      $region45: #{coatten_forward.3} parent=39 // pred_check
        %p291 = pneg %p187
      $region46: #{coatten_forward.3} parent=39 // pred_check_branch
        %293 = sbr.rel (%p291) target = $region48
      $region47: #{coatten_forward.3} parent=39 // pred_region
        %s294 = smul.u32 8, %s15
        %p295 = scmp.lt.s32.totalorder %s294, 31
        %s296 = scalar_select %p295, %s294, 31
        %s297 = smul.addr %s296, 4
        %s298 = scalar_lea.vmem %s7, %s297
        %s299 = smul.u32 8, %s15
      $region48: #{coatten_forward.3} parent=39 // pred_fallthru
        _
      // Predicated region
      $region49: #{coatten_forward.3} parent=39 // pred_check
        %p300 = pneg %p213
      $region50: #{coatten_forward.3} parent=39 // pred_check_branch
        %302 = sbr.rel (%p300) target = $region52
      $region51: #{coatten_forward.3} parent=39 // pred_region
        %s303 = smul.u32 8, %s15
        %p304 = scmp.lt.s32.totalorder %s303, 31
        %s305 = scalar_select %p304, %s303, 31
        %s306 = smul.addr %s305, 8
        %s307 = scalar_lea.vmem %s8, %s306
        %s308 = smul.u32 8, %s15
      $region52: #{coatten_forward.3} parent=39 // pred_fallthru
        _
    $region40: #{coatten_forward.3} parent=5 // pred_fallthru
      _
    %p309 = scmp.le.s32.totalorder 1, %s15
    %p310 = scmp.lt.s32.totalorder %s15, 5
    %p311 = pnand %p309, %p310
    %p312 = pneg %p311
    // Predicated region
    $region53: #{coatten_forward.3} parent=5 // pred_check
      _
    $region54: #{coatten_forward.3} parent=5 // pred_check_branch
      %314 = sbr.rel (%p311) target = $region56
    $region55: #{coatten_forward.3} parent=5 // pred_region
      %s315 = ssub.s32 %s15, 1
      %p316 = pneg %p36
      %p317 = pneg %p33
      %p318 = pneg %p57
      %p319 = pneg %p54
      %p320 = pneg %p78
      %p321 = pneg %p75
      %p322 = pneg %p99
      %p323 = pneg %p96
      %p324 = pneg %p120
      %p325 = pneg %p117
      %p326 = pneg %p141
      %p327 = pneg %p138
      %s328 = smul.u32 8, %s20
      %p329 = scmp.lt.s32.totalorder %s328, 31
      %s330 = scalar_select %p329, %s328, 31
      %s331 = smul.addr %s330, 4
      %s332 = scalar_lea.vmem %s6, %s331
      %p333 = pneg %p167
      %p334 = pneg %p164
      %s335 = smul.u32 8, %s20
      %p336 = scmp.lt.s32.totalorder %s335, 31
      %s337 = scalar_select %p336, %s335, 31
      %s338 = smul.addr %s337, 4
      %s339 = scalar_lea.vmem %s7, %s338
      %p340 = pneg %p193
      %p341 = pneg %p190
      %s342 = smul.u32 8, %s20
      %p343 = scmp.lt.s32.totalorder %s342, 31
      %s344 = scalar_select %p343, %s342, 31
      %s345 = smul.addr %s344, 8
      %s346 = scalar_lea.vmem %s8, %s345
      %p347 = pneg %p219
      %p348 = pneg %p216
      %p349 = pneg %p245
      %p350 = pneg %p242
      %s351 = smul.u32 8, %s20
      %p352 = scmp.lt.s32.totalorder %s351, 31
      %s353 = scalar_select %p352, %s351, 31
      %s354 = smul.addr %s353, 8
      %s355 = scalar_lea.vmem %s9, %s354
      %s356 = smul.u32 8, %s20
      %p357 = scmp.lt.s32.totalorder %s356, 31
      %s358 = scalar_select %p357, %s356, 31
      %s359 = smul.addr %s358, 4
      %s360 = scalar_lea.vmem %s6, %s359
      %s361 = smul.u32 8, %s20
      %s362 = smul.u32 8, %s20
      %p363 = scmp.lt.s32.totalorder %s362, 31
      %s364 = scalar_select %p363, %s362, 31
      %s365 = smul.addr %s364, 4
      %s366 = scalar_lea.vmem %s7, %s365
      %s367 = smul.u32 8, %s20
      %s368 = smul.u32 8, %s20
      %p369 = scmp.lt.s32.totalorder %s368, 31
      %s370 = scalar_select %p369, %s368, 31
      %s371 = smul.addr %s370, 8
      %s372 = scalar_lea.vmem %s8, %s371
      %s373 = smul.u32 8, %s20
      %s374 = smul.u32 8, %s20
      %p375 = scmp.lt.s32.totalorder %s374, 31
      %s376 = scalar_select %p375, %s374, 31
      %s377 = smul.addr %s376, 8
      %s378 = scalar_lea.vmem %s9, %s377
      %s379 = smul.u32 8, %s20
      %v381 = vld [vmem:[%s2] sm:$0xf]
      %v382 = vld [vmem:[%s360] sm:$0xff]
      %v383 = vld [vmem:[%s360 + $0x8] sm:$0xff]
      %v384 = vld [vmem:[%s360 + $0x10] sm:$0xff]
      %v385 = vld [vmem:[%s360 + $0x18] sm:$0xff]
      %v386 = vld [vmem:[%s4] sm:$0xff]
      %388 = vset.pattern.permute.xlu0 0
      %389 = vperm.xlu0 %388, %v386
      %v390 = vpop.permute.xlu0 %389
      %v396 = vunpack.c.l.b16 %v382
      %v397 = vunpack.c.h.b16 %v382
      %v398 = vunpack.c.l.b16 %v383
      %v399 = vunpack.c.h.b16 %v383
      %v400 = vunpack.c.l.b16 %v384
      %v401 = vunpack.c.h.b16 %v384
      %v402 = vunpack.c.l.b16 %v385
      %v403 = vunpack.c.h.b16 %v385
      %v404 = vpack.c.b16 %v396, %v396
      %v405 = vpack.c.b16 %v397, %v397
      %v406 = vpack.c.b16 %v398, %v398
      %v407 = vpack.c.b16 %v399, %v399
      %v408 = vpack.c.b16 %v400, %v400
      %v409 = vpack.c.b16 %v401, %v401
      %v410 = vpack.c.b16 %v402, %v402
      %v411 = vpack.c.b16 %v403, %v403
      %vm412 = vcmask 64512
      %v414 = vsel %vm412, %v381, 0
      %vm416 = vcmask 1043456
      %v418 = vsel %vm416, %v404, 0
      %v421 = vsel %vm416, %v405, 0
      %v424 = vsel %vm416, %v406, 0
      %v427 = vsel %vm416, %v407, 0
      %v430 = vsel %vm416, %v408, 0
      %v433 = vsel %vm416, %v409, 0
      %v436 = vsel %vm416, %v410, 0
      %v439 = vsel %vm416, %v411, 0
      %441 = vmatprep.subr.bf16.mxu0 %v421
      %442 = vmatpush1.bf16.msra.mxu0 %v418
      %443 = vmatprep.subr.bf16.mxu0 0
      %444 = vmatpush1.bf16.msra.mxu0 0
      %445 = vmatprep.subr.bf16.mxu0 0
      %446 = vmatpush1.bf16.msra.mxu0 0
      %447 = vmatprep.subr.bf16.mxu0 0
      %448 = vmatpush1.bf16.msra.mxu0 0
      %449 = vmatprep.subr.bf16.mxu0 0
      %450 = vmatpush1.bf16.msra.mxu0 0
      %451 = vmatprep.subr.bf16.mxu0 0
      %452 = vmatpush1.bf16.msra.mxu0 0
      %453 = vmatprep.subr.bf16.mxu0 0
      %454 = vmatpush1.bf16.msra.mxu0 0
      %455 = vmatprep.subr.bf16.mxu0 0
      %456 = vmatpush1.bf16.msra.mxu0 0
      %457 = vmatprep.subr.bf16.mxu0 0
      %458 = vmatpush1.bf16.msra.mxu0 0
      %459 = vmatprep.subr.bf16.mxu0 0
      %460 = vmatpush1.bf16.msra.mxu0 0
      %461 = vmatprep.subr.bf16.mxu0 0
      %462 = vmatpush1.bf16.msra.mxu0 0
      %463 = vmatprep.subr.bf16.mxu0 0
      %464 = vmatpush1.bf16.msra.mxu0 0
      %465 = vmatprep.subr.bf16.mxu0 0
      %466 = vmatpush1.bf16.msra.mxu0 0
      %467 = vmatprep.subr.bf16.mxu0 0
      %468 = vmatpush1.bf16.msra.mxu0 0
      %469 = vmatprep.subr.bf16.mxu0 0
      %470 = vmatpush1.bf16.msra.mxu0 0
      %471 = vmatprep.subr.bf16.mxu0 0
      %472 = vmatpush1.bf16.msra.mxu0 0
      %473 = vmatprep.mubr.bf16.mxu0 0
      %474 = vmatmul.mubr.bf16.gmra.mrb[0].mxu0 %v414
      %v475 = vpop.f32.mrb[0].mxu0
      %v476 = vadd.f32 %v390, %v475
      %v477 = vpop.f32.mrb[0].mxu0
      %v478 = vadd.f32 %v390, %v477
      %v479 = vpop.f32.mrb[0].mxu0
      %v480 = vpop.f32.mrb[0].mxu0
      %481 = vdwg.mxu0
      %482 = vmatprep.subr.bf16.mxu0 %v427
      %483 = vmatpush1.bf16.msra.mxu0 %v424
      %484 = vmatprep.subr.bf16.mxu0 0
      %485 = vmatpush1.bf16.msra.mxu0 0
      %486 = vmatprep.subr.bf16.mxu0 0
      %487 = vmatpush1.bf16.msra.mxu0 0
      %488 = vmatprep.subr.bf16.mxu0 0
      %489 = vmatpush1.bf16.msra.mxu0 0
      %490 = vmatprep.subr.bf16.mxu0 0
      %491 = vmatpush1.bf16.msra.mxu0 0
      %492 = vmatprep.subr.bf16.mxu0 0
      %493 = vmatpush1.bf16.msra.mxu0 0
      %494 = vmatprep.subr.bf16.mxu0 0
      %495 = vmatpush1.bf16.msra.mxu0 0
      %496 = vmatprep.subr.bf16.mxu0 0
      %497 = vmatpush1.bf16.msra.mxu0 0
      %498 = vmatprep.subr.bf16.mxu0 0
      %499 = vmatpush1.bf16.msra.mxu0 0
      %500 = vmatprep.subr.bf16.mxu0 0
      %501 = vmatpush1.bf16.msra.mxu0 0
      %502 = vmatprep.subr.bf16.mxu0 0
      %503 = vmatpush1.bf16.msra.mxu0 0
      %504 = vmatprep.subr.bf16.mxu0 0
      %505 = vmatpush1.bf16.msra.mxu0 0
      %506 = vmatprep.subr.bf16.mxu0 0
      %507 = vmatpush1.bf16.msra.mxu0 0
      %508 = vmatprep.subr.bf16.mxu0 0
      %509 = vmatpush1.bf16.msra.mxu0 0
      %510 = vmatprep.subr.bf16.mxu0 0
      %511 = vmatpush1.bf16.msra.mxu0 0
      %512 = vmatprep.subr.bf16.mxu0 0
      %513 = vmatpush1.bf16.msra.mxu0 0
      %514 = vmatprep.mubr.bf16.mxu0 0
      %515 = vmatmul.mubr.bf16.gmra.mrb[0].mxu0 %v414
      %v516 = vpop.f32.mrb[0].mxu0
      %v517 = vadd.f32 %v390, %v516
      %v518 = vpop.f32.mrb[0].mxu0
      %v519 = vadd.f32 %v390, %v518
      %v520 = vpop.f32.mrb[0].mxu0
      %v521 = vpop.f32.mrb[0].mxu0
      %522 = vdwg.mxu0
      %523 = vmatprep.subr.bf16.mxu0 %v433
      %524 = vmatpush1.bf16.msra.mxu0 %v430
      %525 = vmatprep.subr.bf16.mxu0 0
      %526 = vmatpush1.bf16.msra.mxu0 0
      %527 = vmatprep.subr.bf16.mxu0 0
      %528 = vmatpush1.bf16.msra.mxu0 0
      %529 = vmatprep.subr.bf16.mxu0 0
      %530 = vmatpush1.bf16.msra.mxu0 0
      %531 = vmatprep.subr.bf16.mxu0 0
      %532 = vmatpush1.bf16.msra.mxu0 0
      %533 = vmatprep.subr.bf16.mxu0 0
      %534 = vmatpush1.bf16.msra.mxu0 0
      %535 = vmatprep.subr.bf16.mxu0 0
      %536 = vmatpush1.bf16.msra.mxu0 0
      %537 = vmatprep.subr.bf16.mxu0 0
      %538 = vmatpush1.bf16.msra.mxu0 0
      %539 = vmatprep.subr.bf16.mxu0 0
      %540 = vmatpush1.bf16.msra.mxu0 0
      %541 = vmatprep.subr.bf16.mxu0 0
      %542 = vmatpush1.bf16.msra.mxu0 0
      %543 = vmatprep.subr.bf16.mxu0 0
      %544 = vmatpush1.bf16.msra.mxu0 0
      %545 = vmatprep.subr.bf16.mxu0 0
      %546 = vmatpush1.bf16.msra.mxu0 0
      %547 = vmatprep.subr.bf16.mxu0 0
      %548 = vmatpush1.bf16.msra.mxu0 0
      %549 = vmatprep.subr.bf16.mxu0 0
      %550 = vmatpush1.bf16.msra.mxu0 0
      %551 = vmatprep.subr.bf16.mxu0 0
      %552 = vmatpush1.bf16.msra.mxu0 0
      %553 = vmatprep.subr.bf16.mxu0 0
      %554 = vmatpush1.bf16.msra.mxu0 0
      %555 = vmatprep.mubr.bf16.mxu0 0
      %556 = vmatmul.mubr.bf16.gmra.mrb[0].mxu0 %v414
      %v557 = vpop.f32.mrb[0].mxu0
      %v558 = vadd.f32 %v390, %v557
      %v559 = vpop.f32.mrb[0].mxu0
      %v560 = vadd.f32 %v390, %v559
      %v561 = vpop.f32.mrb[0].mxu0
      %v562 = vpop.f32.mrb[0].mxu0
      %563 = vdwg.mxu0
      %564 = vmatprep.subr.bf16.mxu0 %v439
      %565 = vmatpush1.bf16.msra.mxu0 %v436
      %566 = vmatprep.subr.bf16.mxu0 0
      %567 = vmatpush1.bf16.msra.mxu0 0
      %568 = vmatprep.subr.bf16.mxu0 0
      %569 = vmatpush1.bf16.msra.mxu0 0
      %570 = vmatprep.subr.bf16.mxu0 0
      %571 = vmatpush1.bf16.msra.mxu0 0
      %572 = vmatprep.subr.bf16.mxu0 0
      %573 = vmatpush1.bf16.msra.mxu0 0
      %574 = vmatprep.subr.bf16.mxu0 0
      %575 = vmatpush1.bf16.msra.mxu0 0
      %576 = vmatprep.subr.bf16.mxu0 0
      %577 = vmatpush1.bf16.msra.mxu0 0
      %578 = vmatprep.subr.bf16.mxu0 0
      %579 = vmatpush1.bf16.msra.mxu0 0
      %580 = vmatprep.subr.bf16.mxu0 0
      %581 = vmatpush1.bf16.msra.mxu0 0
      %582 = vmatprep.subr.bf16.mxu0 0
      %583 = vmatpush1.bf16.msra.mxu0 0
      %584 = vmatprep.subr.bf16.mxu0 0
      %585 = vmatpush1.bf16.msra.mxu0 0
      %586 = vmatprep.subr.bf16.mxu0 0
      %587 = vmatpush1.bf16.msra.mxu0 0
      %588 = vmatprep.subr.bf16.mxu0 0
      %589 = vmatpush1.bf16.msra.mxu0 0
      %590 = vmatprep.subr.bf16.mxu0 0
      %591 = vmatpush1.bf16.msra.mxu0 0
      %592 = vmatprep.subr.bf16.mxu0 0
      %593 = vmatpush1.bf16.msra.mxu0 0
      %594 = vmatprep.subr.bf16.mxu0 0
      %595 = vmatpush1.bf16.msra.mxu0 0
      %596 = vmatprep.mubr.bf16.mxu0 0
      %597 = vmatmul.mubr.bf16.gmra.mrb[0].mxu0 %v414
      %v598 = vpop.f32.mrb[0].mxu0
      %v599 = vadd.f32 %v390, %v598
      %v600 = vpop.f32.mrb[0].mxu0
      %v601 = vadd.f32 %v390, %v600
      %v602 = vpop.f32.mrb[0].mxu0
      %v603 = vpop.f32.mrb[0].mxu0
      %604 = vdwg.mxu0
      %v605 = vld [vmem:[%s3] sm:$0xf]
      %v606 = vld [vmem:[%s366] sm:$0xff]
      %v607 = vld [vmem:[%s366 + $0x8] sm:$0xff]
      %v608 = vld [vmem:[%s366 + $0x10] sm:$0xff]
      %v609 = vld [vmem:[%s366 + $0x18] sm:$0xff]
      %v610 = vld [vmem:[%s5] sm:$0xff]
      %612 = vset.pattern.permute.xlu0 0
      %613 = vperm.xlu0 %612, %v610
      %v614 = vpop.permute.xlu0 %613
      %v620 = vunpack.c.l.b16 %v606
      %v621 = vunpack.c.h.b16 %v606
      %v622 = vunpack.c.l.b16 %v607
      %v623 = vunpack.c.h.b16 %v607
      %v624 = vunpack.c.l.b16 %v608
      %v625 = vunpack.c.h.b16 %v608
      %v626 = vunpack.c.l.b16 %v609
      %v627 = vunpack.c.h.b16 %v609
      %v628 = vpack.c.b16 %v620, %v620
      %v629 = vpack.c.b16 %v621, %v621
      %v630 = vpack.c.b16 %v622, %v622
      %v631 = vpack.c.b16 %v623, %v623
      %v632 = vpack.c.b16 %v624, %v624
      %v633 = vpack.c.b16 %v625, %v625
      %v634 = vpack.c.b16 %v626, %v626
      %v635 = vpack.c.b16 %v627, %v627
      %v637 = vsel %vm412, %v605, 0
      %v640 = vsel %vm416, %v628, 0
      %v643 = vsel %vm416, %v629, 0
      %v646 = vsel %vm416, %v630, 0
      %v649 = vsel %vm416, %v631, 0
      %v652 = vsel %vm416, %v632, 0
      %v655 = vsel %vm416, %v633, 0
      %v658 = vsel %vm416, %v634, 0
      %v661 = vsel %vm416, %v635, 0
      %663 = vmatprep.subr.bf16.mxu0 %v643
      %664 = vmatpush1.bf16.msra.mxu0 %v640
      %665 = vmatprep.subr.bf16.mxu0 0
      %666 = vmatpush1.bf16.msra.mxu0 0
      %667 = vmatprep.subr.bf16.mxu0 0
      %668 = vmatpush1.bf16.msra.mxu0 0
      %669 = vmatprep.subr.bf16.mxu0 0
      %670 = vmatpush1.bf16.msra.mxu0 0
      %671 = vmatprep.subr.bf16.mxu0 0
      %672 = vmatpush1.bf16.msra.mxu0 0
      %673 = vmatprep.subr.bf16.mxu0 0
      %674 = vmatpush1.bf16.msra.mxu0 0
      %675 = vmatprep.subr.bf16.mxu0 0
      %676 = vmatpush1.bf16.msra.mxu0 0
      %677 = vmatprep.subr.bf16.mxu0 0
      %678 = vmatpush1.bf16.msra.mxu0 0
      %679 = vmatprep.subr.bf16.mxu0 0
      %680 = vmatpush1.bf16.msra.mxu0 0
      %681 = vmatprep.subr.bf16.mxu0 0
      %682 = vmatpush1.bf16.msra.mxu0 0
      %683 = vmatprep.subr.bf16.mxu0 0
      %684 = vmatpush1.bf16.msra.mxu0 0
      %685 = vmatprep.subr.bf16.mxu0 0
      %686 = vmatpush1.bf16.msra.mxu0 0
      %687 = vmatprep.subr.bf16.mxu0 0
      %688 = vmatpush1.bf16.msra.mxu0 0
      %689 = vmatprep.subr.bf16.mxu0 0
      %690 = vmatpush1.bf16.msra.mxu0 0
      %691 = vmatprep.subr.bf16.mxu0 0
      %692 = vmatpush1.bf16.msra.mxu0 0
      %693 = vmatprep.subr.bf16.mxu0 0
      %694 = vmatpush1.bf16.msra.mxu0 0
      %695 = vmatprep.mubr.bf16.mxu0 0
      %696 = vmatmul.mubr.bf16.gmra.mrb[0].mxu0 %v637
      %v697 = vpop.f32.mrb[0].mxu0
      %v698 = vadd.f32 %v614, %v697
      %v699 = vpop.f32.mrb[0].mxu0
      %v700 = vadd.f32 %v614, %v699
      %v701 = vpop.f32.mrb[0].mxu0
      %v702 = vpop.f32.mrb[0].mxu0
      %703 = vdwg.mxu0
      %704 = vmatprep.subr.bf16.mxu0 %v649
      %705 = vmatpush1.bf16.msra.mxu0 %v646
      %706 = vmatprep.subr.bf16.mxu0 0
      %707 = vmatpush1.bf16.msra.mxu0 0
      %708 = vmatprep.subr.bf16.mxu0 0
      %709 = vmatpush1.bf16.msra.mxu0 0
      %710 = vmatprep.subr.bf16.mxu0 0
      %711 = vmatpush1.bf16.msra.mxu0 0
      %712 = vmatprep.subr.bf16.mxu0 0
      %713 = vmatpush1.bf16.msra.mxu0 0
      %714 = vmatprep.subr.bf16.mxu0 0
      %715 = vmatpush1.bf16.msra.mxu0 0
      %716 = vmatprep.subr.bf16.mxu0 0
      %717 = vmatpush1.bf16.msra.mxu0 0
      %718 = vmatprep.subr.bf16.mxu0 0
      %719 = vmatpush1.bf16.msra.mxu0 0
      %720 = vmatprep.subr.bf16.mxu0 0
      %721 = vmatpush1.bf16.msra.mxu0 0
      %722 = vmatprep.subr.bf16.mxu0 0
      %723 = vmatpush1.bf16.msra.mxu0 0
      %724 = vmatprep.subr.bf16.mxu0 0
      %725 = vmatpush1.bf16.msra.mxu0 0
      %726 = vmatprep.subr.bf16.mxu0 0
      %727 = vmatpush1.bf16.msra.mxu0 0
      %728 = vmatprep.subr.bf16.mxu0 0
      %729 = vmatpush1.bf16.msra.mxu0 0
      %730 = vmatprep.subr.bf16.mxu0 0
      %731 = vmatpush1.bf16.msra.mxu0 0
      %732 = vmatprep.subr.bf16.mxu0 0
      %733 = vmatpush1.bf16.msra.mxu0 0
      %734 = vmatprep.subr.bf16.mxu0 0
      %735 = vmatpush1.bf16.msra.mxu0 0
      %736 = vmatprep.mubr.bf16.mxu0 0
      %737 = vmatmul.mubr.bf16.gmra.mrb[0].mxu0 %v637
      %v738 = vpop.f32.mrb[0].mxu0
      %v739 = vadd.f32 %v614, %v738
      %v740 = vpop.f32.mrb[0].mxu0
      %v741 = vadd.f32 %v614, %v740
      %v742 = vpop.f32.mrb[0].mxu0
      %v743 = vpop.f32.mrb[0].mxu0
      %744 = vdwg.mxu0
      %745 = vmatprep.subr.bf16.mxu0 %v655
      %746 = vmatpush1.bf16.msra.mxu0 %v652
      %747 = vmatprep.subr.bf16.mxu0 0
      %748 = vmatpush1.bf16.msra.mxu0 0
      %749 = vmatprep.subr.bf16.mxu0 0
      %750 = vmatpush1.bf16.msra.mxu0 0
      %751 = vmatprep.subr.bf16.mxu0 0
      %752 = vmatpush1.bf16.msra.mxu0 0
      %753 = vmatprep.subr.bf16.mxu0 0
      %754 = vmatpush1.bf16.msra.mxu0 0
      %755 = vmatprep.subr.bf16.mxu0 0
      %756 = vmatpush1.bf16.msra.mxu0 0
      %757 = vmatprep.subr.bf16.mxu0 0
      %758 = vmatpush1.bf16.msra.mxu0 0
      %759 = vmatprep.subr.bf16.mxu0 0
      %760 = vmatpush1.bf16.msra.mxu0 0
      %761 = vmatprep.subr.bf16.mxu0 0
      %762 = vmatpush1.bf16.msra.mxu0 0
      %763 = vmatprep.subr.bf16.mxu0 0
      %764 = vmatpush1.bf16.msra.mxu0 0
      %765 = vmatprep.subr.bf16.mxu0 0
      %766 = vmatpush1.bf16.msra.mxu0 0
      %767 = vmatprep.subr.bf16.mxu0 0
      %768 = vmatpush1.bf16.msra.mxu0 0
      %769 = vmatprep.subr.bf16.mxu0 0
      %770 = vmatpush1.bf16.msra.mxu0 0
      %771 = vmatprep.subr.bf16.mxu0 0
      %772 = vmatpush1.bf16.msra.mxu0 0
      %773 = vmatprep.subr.bf16.mxu0 0
      %774 = vmatpush1.bf16.msra.mxu0 0
      %775 = vmatprep.subr.bf16.mxu0 0
      %776 = vmatpush1.bf16.msra.mxu0 0
      %777 = vmatprep.mubr.bf16.mxu0 0
      %778 = vmatmul.mubr.bf16.gmra.mrb[0].mxu0 %v637
      %v779 = vpop.f32.mrb[0].mxu0
      %v780 = vadd.f32 %v614, %v779
      %v781 = vpop.f32.mrb[0].mxu0
      %v782 = vadd.f32 %v614, %v781
      %v783 = vpop.f32.mrb[0].mxu0
      %v784 = vpop.f32.mrb[0].mxu0
      %785 = vdwg.mxu0
      %786 = vmatprep.subr.bf16.mxu0 %v661
      %787 = vmatpush1.bf16.msra.mxu0 %v658
      %788 = vmatprep.subr.bf16.mxu0 0
      %789 = vmatpush1.bf16.msra.mxu0 0
      %790 = vmatprep.subr.bf16.mxu0 0
      %791 = vmatpush1.bf16.msra.mxu0 0
      %792 = vmatprep.subr.bf16.mxu0 0
      %793 = vmatpush1.bf16.msra.mxu0 0
      %794 = vmatprep.subr.bf16.mxu0 0
      %795 = vmatpush1.bf16.msra.mxu0 0
      %796 = vmatprep.subr.bf16.mxu0 0
      %797 = vmatpush1.bf16.msra.mxu0 0
      %798 = vmatprep.subr.bf16.mxu0 0
      %799 = vmatpush1.bf16.msra.mxu0 0
      %800 = vmatprep.subr.bf16.mxu0 0
      %801 = vmatpush1.bf16.msra.mxu0 0
      %802 = vmatprep.subr.bf16.mxu0 0
      %803 = vmatpush1.bf16.msra.mxu0 0
      %804 = vmatprep.subr.bf16.mxu0 0
      %805 = vmatpush1.bf16.msra.mxu0 0
      %806 = vmatprep.subr.bf16.mxu0 0
      %807 = vmatpush1.bf16.msra.mxu0 0
      %808 = vmatprep.subr.bf16.mxu0 0
      %809 = vmatpush1.bf16.msra.mxu0 0
      %810 = vmatprep.subr.bf16.mxu0 0
      %811 = vmatpush1.bf16.msra.mxu0 0
      %812 = vmatprep.subr.bf16.mxu0 0
      %813 = vmatpush1.bf16.msra.mxu0 0
      %814 = vmatprep.subr.bf16.mxu0 0
      %815 = vmatpush1.bf16.msra.mxu0 0
      %816 = vmatprep.subr.bf16.mxu0 0
      %817 = vmatpush1.bf16.msra.mxu0 0
      %818 = vmatprep.mubr.bf16.mxu0 0
      %819 = vmatmul.mubr.bf16.gmra.mrb[0].mxu0 %v637
      %v820 = vpop.f32.mrb[0].mxu0
      %v821 = vadd.f32 %v614, %v820
      %v822 = vpop.f32.mrb[0].mxu0
      %v823 = vadd.f32 %v614, %v822
      %v824 = vpop.f32.mrb[0].mxu0
      %v825 = vpop.f32.mrb[0].mxu0
      %826 = vdwg.mxu0
      %v827 = vld [vmem:[%s0] sm:$0xff]
      %v828 = vld [vmem:[%s1] sm:$0xff]
      %v830 = vsel %vm412, %v828, 0
      %832 = vmatprep.subr.mxu0 %v700
      %833 = vmatpush1.msra.mxu0 %v698
      %834 = vmatprep.subr.mxu0 0.0
      %835 = vmatpush1.msra.mxu0 0.0
      %836 = vmatprep.subr.mxu0 0.0
      %837 = vmatpush1.msra.mxu0 0.0
      %838 = vmatprep.subr.mxu0 0.0
      %839 = vmatpush1.msra.mxu0 0.0
      %840 = vmatprep.subr.mxu0 0.0
      %841 = vmatpush1.msra.mxu0 0.0
      %842 = vmatprep.subr.mxu0 0.0
      %843 = vmatpush1.msra.mxu0 0.0
      %844 = vmatprep.subr.mxu0 0.0
      %845 = vmatpush1.msra.mxu0 0.0
      %846 = vmatprep.subr.mxu0 0.0
      %847 = vmatpush1.msra.mxu0 0.0
      %848 = vmatprep.subr.mxu0 0.0
      %849 = vmatpush1.msra.mxu0 0.0
      %850 = vmatprep.subr.mxu0 0.0
      %851 = vmatpush1.msra.mxu0 0.0
      %852 = vmatprep.subr.mxu0 0.0
      %853 = vmatpush1.msra.mxu0 0.0
      %854 = vmatprep.subr.mxu0 0.0
      %855 = vmatpush1.msra.mxu0 0.0
      %856 = vmatprep.subr.mxu0 0.0
      %857 = vmatpush1.msra.mxu0 0.0
      %858 = vmatprep.subr.mxu0 0.0
      %859 = vmatpush1.msra.mxu0 0.0
      %860 = vmatprep.subr.mxu0 0.0
      %861 = vmatpush1.msra.mxu0 0.0
      %862 = vmatprep.subr.mxu0 0.0
      %863 = vmatpush1.msra.mxu0 0.0
      %864 = vmatprep.subr.mxu0 0.0
      %865 = vmatpush1.msra.mxu0 0.0
      %866 = vmatprep.subr.mxu0 0.0
      %867 = vmatpush1.msra.mxu0 0.0
      %868 = vmatprep.subr.mxu0 0.0
      %869 = vmatpush1.msra.mxu0 0.0
      %870 = vmatprep.subr.mxu0 0.0
      %871 = vmatpush1.msra.mxu0 0.0
      %872 = vmatprep.subr.mxu0 0.0
      %873 = vmatpush1.msra.mxu0 0.0
      %874 = vmatprep.subr.mxu0 0.0
      %875 = vmatpush1.msra.mxu0 0.0
      %876 = vmatprep.subr.mxu0 0.0
      %877 = vmatpush1.msra.mxu0 0.0
      %878 = vmatprep.subr.mxu0 0.0
      %879 = vmatpush1.msra.mxu0 0.0
      %880 = vmatprep.subr.mxu0 0.0
      %881 = vmatpush1.msra.mxu0 0.0
      %882 = vmatprep.subr.mxu0 0.0
      %883 = vmatpush1.msra.mxu0 0.0
      %884 = vmatprep.subr.mxu0 0.0
      %885 = vmatpush1.msra.mxu0 0.0
      %886 = vmatprep.subr.mxu0 0.0
      %887 = vmatpush1.msra.mxu0 0.0
      %888 = vmatprep.subr.mxu0 0.0
      %889 = vmatpush1.msra.mxu0 0.0
      %890 = vmatprep.subr.mxu0 0.0
      %891 = vmatpush1.msra.mxu0 0.0
      %892 = vmatprep.subr.mxu0 0.0
      %893 = vmatpush1.msra.mxu0 0.0
      %894 = vmatprep.subr.mxu0 0.0
      %895 = vmatpush1.msra.mxu0 0.0
      %896 = vmatprep.mubr.f32.mxu0 0.0
      %897 = vmatmul.mubr.f32.gmra.mrb[0].mxu0 %v830
      %v898 = vpop.f32.mrb[0].mxu0
      %v899 = vadd.f32 0.0, %v898
      %v900 = vpop.f32.mrb[0].mxu0
      %v901 = vadd.f32 0.0, %v900
      %902 = vdwg.mxu0
      %903 = vmatprep.subr.mxu0 %v741
      %904 = vmatpush1.msra.mxu0 %v739
      %905 = vmatprep.subr.mxu0 0.0
      %906 = vmatpush1.msra.mxu0 0.0
      %907 = vmatprep.subr.mxu0 0.0
      %908 = vmatpush1.msra.mxu0 0.0
      %909 = vmatprep.subr.mxu0 0.0
      %910 = vmatpush1.msra.mxu0 0.0
      %911 = vmatprep.subr.mxu0 0.0
      %912 = vmatpush1.msra.mxu0 0.0
      %913 = vmatprep.subr.mxu0 0.0
      %914 = vmatpush1.msra.mxu0 0.0
      %915 = vmatprep.subr.mxu0 0.0
      %916 = vmatpush1.msra.mxu0 0.0
      %917 = vmatprep.subr.mxu0 0.0
      %918 = vmatpush1.msra.mxu0 0.0
      %919 = vmatprep.subr.mxu0 0.0
      %920 = vmatpush1.msra.mxu0 0.0
      %921 = vmatprep.subr.mxu0 0.0
      %922 = vmatpush1.msra.mxu0 0.0
      %923 = vmatprep.subr.mxu0 0.0
      %924 = vmatpush1.msra.mxu0 0.0
      %925 = vmatprep.subr.mxu0 0.0
      %926 = vmatpush1.msra.mxu0 0.0
      %927 = vmatprep.subr.mxu0 0.0
      %928 = vmatpush1.msra.mxu0 0.0
      %929 = vmatprep.subr.mxu0 0.0
      %930 = vmatpush1.msra.mxu0 0.0
      %931 = vmatprep.subr.mxu0 0.0
      %932 = vmatpush1.msra.mxu0 0.0
      %933 = vmatprep.subr.mxu0 0.0
      %934 = vmatpush1.msra.mxu0 0.0
      %935 = vmatprep.subr.mxu0 0.0
      %936 = vmatpush1.msra.mxu0 0.0
      %937 = vmatprep.subr.mxu0 0.0
      %938 = vmatpush1.msra.mxu0 0.0
      %939 = vmatprep.subr.mxu0 0.0
      %940 = vmatpush1.msra.mxu0 0.0
      %941 = vmatprep.subr.mxu0 0.0
      %942 = vmatpush1.msra.mxu0 0.0
      %943 = vmatprep.subr.mxu0 0.0
      %944 = vmatpush1.msra.mxu0 0.0
      %945 = vmatprep.subr.mxu0 0.0
      %946 = vmatpush1.msra.mxu0 0.0
      %947 = vmatprep.subr.mxu0 0.0
      %948 = vmatpush1.msra.mxu0 0.0
      %949 = vmatprep.subr.mxu0 0.0
      %950 = vmatpush1.msra.mxu0 0.0
      %951 = vmatprep.subr.mxu0 0.0
      %952 = vmatpush1.msra.mxu0 0.0
      %953 = vmatprep.subr.mxu0 0.0
      %954 = vmatpush1.msra.mxu0 0.0
      %955 = vmatprep.subr.mxu0 0.0
      %956 = vmatpush1.msra.mxu0 0.0
      %957 = vmatprep.subr.mxu0 0.0
      %958 = vmatpush1.msra.mxu0 0.0
      %959 = vmatprep.subr.mxu0 0.0
      %960 = vmatpush1.msra.mxu0 0.0
      %961 = vmatprep.subr.mxu0 0.0
      %962 = vmatpush1.msra.mxu0 0.0
      %963 = vmatprep.subr.mxu0 0.0
      %964 = vmatpush1.msra.mxu0 0.0
      %965 = vmatprep.subr.mxu0 0.0
      %966 = vmatpush1.msra.mxu0 0.0
      %967 = vmatprep.mubr.f32.mxu0 0.0
      %968 = vmatmul.mubr.f32.gmra.mrb[0].mxu0 %v830
      %v969 = vpop.f32.mrb[0].mxu0
      %v970 = vadd.f32 0.0, %v969
      %v971 = vpop.f32.mrb[0].mxu0
      %v972 = vadd.f32 0.0, %v971
      %973 = vdwg.mxu0
      %974 = vmatprep.subr.mxu0 %v782
      %975 = vmatpush1.msra.mxu0 %v780
      %976 = vmatprep.subr.mxu0 0.0
      %977 = vmatpush1.msra.mxu0 0.0
      %978 = vmatprep.subr.mxu0 0.0
      %979 = vmatpush1.msra.mxu0 0.0
      %980 = vmatprep.subr.mxu0 0.0
      %981 = vmatpush1.msra.mxu0 0.0
      %982 = vmatprep.subr.mxu0 0.0
      %983 = vmatpush1.msra.mxu0 0.0
      %984 = vmatprep.subr.mxu0 0.0
      %985 = vmatpush1.msra.mxu0 0.0
      %986 = vmatprep.subr.mxu0 0.0
      %987 = vmatpush1.msra.mxu0 0.0
      %988 = vmatprep.subr.mxu0 0.0
      %989 = vmatpush1.msra.mxu0 0.0
      %990 = vmatprep.subr.mxu0 0.0
      %991 = vmatpush1.msra.mxu0 0.0
      %992 = vmatprep.subr.mxu0 0.0
      %993 = vmatpush1.msra.mxu0 0.0
      %994 = vmatprep.subr.mxu0 0.0
      %995 = vmatpush1.msra.mxu0 0.0
      %996 = vmatprep.subr.mxu0 0.0
      %997 = vmatpush1.msra.mxu0 0.0
      %998 = vmatprep.subr.mxu0 0.0
      %999 = vmatpush1.msra.mxu0 0.0
      %1000 = vmatprep.subr.mxu0 0.0
      %1001 = vmatpush1.msra.mxu0 0.0
      %1002 = vmatprep.subr.mxu0 0.0
      %1003 = vmatpush1.msra.mxu0 0.0
      %1004 = vmatprep.subr.mxu0 0.0
      %1005 = vmatpush1.msra.mxu0 0.0
      %1006 = vmatprep.subr.mxu0 0.0
      %1007 = vmatpush1.msra.mxu0 0.0
      %1008 = vmatprep.subr.mxu0 0.0
      %1009 = vmatpush1.msra.mxu0 0.0
      %1010 = vmatprep.subr.mxu0 0.0
      %1011 = vmatpush1.msra.mxu0 0.0
      %1012 = vmatprep.subr.mxu0 0.0
      %1013 = vmatpush1.msra.mxu0 0.0
      %1014 = vmatprep.subr.mxu0 0.0
      %1015 = vmatpush1.msra.mxu0 0.0
      %1016 = vmatprep.subr.mxu0 0.0
      %1017 = vmatpush1.msra.mxu0 0.0
      %1018 = vmatprep.subr.mxu0 0.0
      %1019 = vmatpush1.msra.mxu0 0.0
      %1020 = vmatprep.subr.mxu0 0.0
      %1021 = vmatpush1.msra.mxu0 0.0
      %1022 = vmatprep.subr.mxu0 0.0
      %1023 = vmatpush1.msra.mxu0 0.0
      %1024 = vmatprep.subr.mxu0 0.0
      %1025 = vmatpush1.msra.mxu0 0.0
      %1026 = vmatprep.subr.mxu0 0.0
      %1027 = vmatpush1.msra.mxu0 0.0
      %1028 = vmatprep.subr.mxu0 0.0
      %1029 = vmatpush1.msra.mxu0 0.0
      %1030 = vmatprep.subr.mxu0 0.0
      %1031 = vmatpush1.msra.mxu0 0.0
      %1032 = vmatprep.subr.mxu0 0.0
      %1033 = vmatpush1.msra.mxu0 0.0
      %1034 = vmatprep.subr.mxu0 0.0
      %1035 = vmatpush1.msra.mxu0 0.0
      %1036 = vmatprep.subr.mxu0 0.0
      %1037 = vmatpush1.msra.mxu0 0.0
      %1038 = vmatprep.mubr.f32.mxu0 0.0
      %1039 = vmatmul.mubr.f32.gmra.mrb[0].mxu0 %v830
      %v1040 = vpop.f32.mrb[0].mxu0
      %v1041 = vadd.f32 0.0, %v1040
      %v1042 = vpop.f32.mrb[0].mxu0
      %v1043 = vadd.f32 0.0, %v1042
      %1044 = vdwg.mxu0
      %1045 = vmatprep.subr.mxu0 %v823
      %1046 = vmatpush1.msra.mxu0 %v821
      %1047 = vmatprep.subr.mxu0 0.0
      %1048 = vmatpush1.msra.mxu0 0.0
      %1049 = vmatprep.subr.mxu0 0.0
      %1050 = vmatpush1.msra.mxu0 0.0
      %1051 = vmatprep.subr.mxu0 0.0
      %1052 = vmatpush1.msra.mxu0 0.0
      %1053 = vmatprep.subr.mxu0 0.0
      %1054 = vmatpush1.msra.mxu0 0.0
      %1055 = vmatprep.subr.mxu0 0.0
      %1056 = vmatpush1.msra.mxu0 0.0
      %1057 = vmatprep.subr.mxu0 0.0
      %1058 = vmatpush1.msra.mxu0 0.0
      %1059 = vmatprep.subr.mxu0 0.0
      %1060 = vmatpush1.msra.mxu0 0.0
      %1061 = vmatprep.subr.mxu0 0.0
      %1062 = vmatpush1.msra.mxu0 0.0
      %1063 = vmatprep.subr.mxu0 0.0
      %1064 = vmatpush1.msra.mxu0 0.0
      %1065 = vmatprep.subr.mxu0 0.0
      %1066 = vmatpush1.msra.mxu0 0.0
      %1067 = vmatprep.subr.mxu0 0.0
      %1068 = vmatpush1.msra.mxu0 0.0
      %1069 = vmatprep.subr.mxu0 0.0
      %1070 = vmatpush1.msra.mxu0 0.0
      %1071 = vmatprep.subr.mxu0 0.0
      %1072 = vmatpush1.msra.mxu0 0.0
      %1073 = vmatprep.subr.mxu0 0.0
      %1074 = vmatpush1.msra.mxu0 0.0
      %1075 = vmatprep.subr.mxu0 0.0
      %1076 = vmatpush1.msra.mxu0 0.0
      %1077 = vmatprep.subr.mxu0 0.0
      %1078 = vmatpush1.msra.mxu0 0.0
      %1079 = vmatprep.subr.mxu0 0.0
      %1080 = vmatpush1.msra.mxu0 0.0
      %1081 = vmatprep.subr.mxu0 0.0
      %1082 = vmatpush1.msra.mxu0 0.0
      %1083 = vmatprep.subr.mxu0 0.0
      %1084 = vmatpush1.msra.mxu0 0.0
      %1085 = vmatprep.subr.mxu0 0.0
      %1086 = vmatpush1.msra.mxu0 0.0
      %1087 = vmatprep.subr.mxu0 0.0
      %1088 = vmatpush1.msra.mxu0 0.0
      %1089 = vmatprep.subr.mxu0 0.0
      %1090 = vmatpush1.msra.mxu0 0.0
      %1091 = vmatprep.subr.mxu0 0.0
      %1092 = vmatpush1.msra.mxu0 0.0
      %1093 = vmatprep.subr.mxu0 0.0
      %1094 = vmatpush1.msra.mxu0 0.0
      %1095 = vmatprep.subr.mxu0 0.0
      %1096 = vmatpush1.msra.mxu0 0.0
      %1097 = vmatprep.subr.mxu0 0.0
      %1098 = vmatpush1.msra.mxu0 0.0
      %1099 = vmatprep.subr.mxu0 0.0
      %1100 = vmatpush1.msra.mxu0 0.0
      %1101 = vmatprep.subr.mxu0 0.0
      %1102 = vmatpush1.msra.mxu0 0.0
      %1103 = vmatprep.subr.mxu0 0.0
      %1104 = vmatpush1.msra.mxu0 0.0
      %1105 = vmatprep.subr.mxu0 0.0
      %1106 = vmatpush1.msra.mxu0 0.0
      %1107 = vmatprep.subr.mxu0 0.0
      %1108 = vmatpush1.msra.mxu0 0.0
      %1109 = vmatprep.mubr.f32.mxu0 0.0
      %1110 = vmatmul.mubr.f32.gmra.mrb[0].mxu0 %v830
      %v1111 = vpop.f32.mrb[0].mxu0
      %v1112 = vadd.f32 0.0, %v1111
      %v1113 = vpop.f32.mrb[0].mxu0
      %v1114 = vadd.f32 0.0, %v1113
      %1115 = vdwg.mxu0
      %v1117 = vsel %vm412, %v827, 0
      %1119 = vmatprep.subr.mxu0 %v478
      %1120 = vmatpush1.msra.mxu0 %v476
      %1121 = vmatprep.subr.mxu0 0.0
      %1122 = vmatpush1.msra.mxu0 0.0
      %1123 = vmatprep.subr.mxu0 0.0
      %1124 = vmatpush1.msra.mxu0 0.0
      %1125 = vmatprep.subr.mxu0 0.0
      %1126 = vmatpush1.msra.mxu0 0.0
      %1127 = vmatprep.subr.mxu0 0.0
      %1128 = vmatpush1.msra.mxu0 0.0
      %1129 = vmatprep.subr.mxu0 0.0
      %1130 = vmatpush1.msra.mxu0 0.0
      %1131 = vmatprep.subr.mxu0 0.0
      %1132 = vmatpush1.msra.mxu0 0.0
      %1133 = vmatprep.subr.mxu0 0.0
      %1134 = vmatpush1.msra.mxu0 0.0
      %1135 = vmatprep.subr.mxu0 0.0
      %1136 = vmatpush1.msra.mxu0 0.0
      %1137 = vmatprep.subr.mxu0 0.0
      %1138 = vmatpush1.msra.mxu0 0.0
      %1139 = vmatprep.subr.mxu0 0.0
      %1140 = vmatpush1.msra.mxu0 0.0
      %1141 = vmatprep.subr.mxu0 0.0
      %1142 = vmatpush1.msra.mxu0 0.0
      %1143 = vmatprep.subr.mxu0 0.0
      %1144 = vmatpush1.msra.mxu0 0.0
      %1145 = vmatprep.subr.mxu0 0.0
      %1146 = vmatpush1.msra.mxu0 0.0
      %1147 = vmatprep.subr.mxu0 0.0
      %1148 = vmatpush1.msra.mxu0 0.0
      %1149 = vmatprep.subr.mxu0 0.0
      %1150 = vmatpush1.msra.mxu0 0.0
      %1151 = vmatprep.subr.mxu0 0.0
      %1152 = vmatpush1.msra.mxu0 0.0
      %1153 = vmatprep.subr.mxu0 0.0
      %1154 = vmatpush1.msra.mxu0 0.0
      %1155 = vmatprep.subr.mxu0 0.0
      %1156 = vmatpush1.msra.mxu0 0.0
      %1157 = vmatprep.subr.mxu0 0.0
      %1158 = vmatpush1.msra.mxu0 0.0
      %1159 = vmatprep.subr.mxu0 0.0
      %1160 = vmatpush1.msra.mxu0 0.0
      %1161 = vmatprep.subr.mxu0 0.0
      %1162 = vmatpush1.msra.mxu0 0.0
      %1163 = vmatprep.subr.mxu0 0.0
      %1164 = vmatpush1.msra.mxu0 0.0
      %1165 = vmatprep.subr.mxu0 0.0
      %1166 = vmatpush1.msra.mxu0 0.0
      %1167 = vmatprep.subr.mxu0 0.0
      %1168 = vmatpush1.msra.mxu0 0.0
      %1169 = vmatprep.subr.mxu0 0.0
      %1170 = vmatpush1.msra.mxu0 0.0
      %1171 = vmatprep.subr.mxu0 0.0
      %1172 = vmatpush1.msra.mxu0 0.0
      %1173 = vmatprep.subr.mxu0 0.0
      %1174 = vmatpush1.msra.mxu0 0.0
      %1175 = vmatprep.subr.mxu0 0.0
      %1176 = vmatpush1.msra.mxu0 0.0
      %1177 = vmatprep.subr.mxu0 0.0
      %1178 = vmatpush1.msra.mxu0 0.0
      %1179 = vmatprep.subr.mxu0 0.0
      %1180 = vmatpush1.msra.mxu0 0.0
      %1181 = vmatprep.subr.mxu0 0.0
      %1182 = vmatpush1.msra.mxu0 0.0
      %1183 = vmatprep.mubr.f32.mxu0 0.0
      %1184 = vmatmul.mubr.f32.gmra.mrb[0].mxu0 %v1117
      %v1185 = vpop.f32.mrb[0].mxu0
      %v1186 = vadd.f32 %v899, %v1185
      %v1187 = vpop.f32.mrb[0].mxu0
      %v1188 = vadd.f32 %v901, %v1187
      %1189 = vdwg.mxu0
      %1190 = vmatprep.subr.mxu0 %v519
      %1191 = vmatpush1.msra.mxu0 %v517
      %1192 = vmatprep.subr.mxu0 0.0
      %1193 = vmatpush1.msra.mxu0 0.0
      %1194 = vmatprep.subr.mxu0 0.0
      %1195 = vmatpush1.msra.mxu0 0.0
      %1196 = vmatprep.subr.mxu0 0.0
      %1197 = vmatpush1.msra.mxu0 0.0
      %1198 = vmatprep.subr.mxu0 0.0
      %1199 = vmatpush1.msra.mxu0 0.0
      %1200 = vmatprep.subr.mxu0 0.0
      %1201 = vmatpush1.msra.mxu0 0.0
      %1202 = vmatprep.subr.mxu0 0.0
      %1203 = vmatpush1.msra.mxu0 0.0
      %1204 = vmatprep.subr.mxu0 0.0
      %1205 = vmatpush1.msra.mxu0 0.0
      %1206 = vmatprep.subr.mxu0 0.0
      %1207 = vmatpush1.msra.mxu0 0.0
      %1208 = vmatprep.subr.mxu0 0.0
      %1209 = vmatpush1.msra.mxu0 0.0
      %1210 = vmatprep.subr.mxu0 0.0
      %1211 = vmatpush1.msra.mxu0 0.0
      %1212 = vmatprep.subr.mxu0 0.0
      %1213 = vmatpush1.msra.mxu0 0.0
      %1214 = vmatprep.subr.mxu0 0.0
      %1215 = vmatpush1.msra.mxu0 0.0
      %1216 = vmatprep.subr.mxu0 0.0
      %1217 = vmatpush1.msra.mxu0 0.0
      %1218 = vmatprep.subr.mxu0 0.0
      %1219 = vmatpush1.msra.mxu0 0.0
      %1220 = vmatprep.subr.mxu0 0.0
      %1221 = vmatpush1.msra.mxu0 0.0
      %1222 = vmatprep.subr.mxu0 0.0
      %1223 = vmatpush1.msra.mxu0 0.0
      %1224 = vmatprep.subr.mxu0 0.0
      %1225 = vmatpush1.msra.mxu0 0.0
      %1226 = vmatprep.subr.mxu0 0.0
      %1227 = vmatpush1.msra.mxu0 0.0
      %1228 = vmatprep.subr.mxu0 0.0
      %1229 = vmatpush1.msra.mxu0 0.0
      %1230 = vmatprep.subr.mxu0 0.0
      %1231 = vmatpush1.msra.mxu0 0.0
      %1232 = vmatprep.subr.mxu0 0.0
      %1233 = vmatpush1.msra.mxu0 0.0
      %1234 = vmatprep.subr.mxu0 0.0
      %1235 = vmatpush1.msra.mxu0 0.0
      %1236 = vmatprep.subr.mxu0 0.0
      %1237 = vmatpush1.msra.mxu0 0.0
      %1238 = vmatprep.subr.mxu0 0.0
      %1239 = vmatpush1.msra.mxu0 0.0
      %1240 = vmatprep.subr.mxu0 0.0
      %1241 = vmatpush1.msra.mxu0 0.0
      %1242 = vmatprep.subr.mxu0 0.0
      %1243 = vmatpush1.msra.mxu0 0.0
      %1244 = vmatprep.subr.mxu0 0.0
      %1245 = vmatpush1.msra.mxu0 0.0
      %1246 = vmatprep.subr.mxu0 0.0
      %1247 = vmatpush1.msra.mxu0 0.0
      %1248 = vmatprep.subr.mxu0 0.0
      %1249 = vmatpush1.msra.mxu0 0.0
      %1250 = vmatprep.subr.mxu0 0.0
      %1251 = vmatpush1.msra.mxu0 0.0
      %1252 = vmatprep.subr.mxu0 0.0
      %1253 = vmatpush1.msra.mxu0 0.0
      %1254 = vmatprep.mubr.f32.mxu0 0.0
      %1255 = vmatmul.mubr.f32.gmra.mrb[0].mxu0 %v1117
      %v1256 = vpop.f32.mrb[0].mxu0
      %v1257 = vadd.f32 %v970, %v1256
      %v1258 = vpop.f32.mrb[0].mxu0
      %v1259 = vadd.f32 %v972, %v1258
      %1260 = vdwg.mxu0
      %1261 = vmatprep.subr.mxu0 %v560
      %1262 = vmatpush1.msra.mxu0 %v558
      %1263 = vmatprep.subr.mxu0 0.0
      %1264 = vmatpush1.msra.mxu0 0.0
      %1265 = vmatprep.subr.mxu0 0.0
      %1266 = vmatpush1.msra.mxu0 0.0
      %1267 = vmatprep.subr.mxu0 0.0
      %1268 = vmatpush1.msra.mxu0 0.0
      %1269 = vmatprep.subr.mxu0 0.0
      %1270 = vmatpush1.msra.mxu0 0.0
      %1271 = vmatprep.subr.mxu0 0.0
      %1272 = vmatpush1.msra.mxu0 0.0
      %1273 = vmatprep.subr.mxu0 0.0
      %1274 = vmatpush1.msra.mxu0 0.0
      %1275 = vmatprep.subr.mxu0 0.0
      %1276 = vmatpush1.msra.mxu0 0.0
      %1277 = vmatprep.subr.mxu0 0.0
      %1278 = vmatpush1.msra.mxu0 0.0
      %1279 = vmatprep.subr.mxu0 0.0
      %1280 = vmatpush1.msra.mxu0 0.0
      %1281 = vmatprep.subr.mxu0 0.0
      %1282 = vmatpush1.msra.mxu0 0.0
      %1283 = vmatprep.subr.mxu0 0.0
      %1284 = vmatpush1.msra.mxu0 0.0
      %1285 = vmatprep.subr.mxu0 0.0
      %1286 = vmatpush1.msra.mxu0 0.0
      %1287 = vmatprep.subr.mxu0 0.0
      %1288 = vmatpush1.msra.mxu0 0.0
      %1289 = vmatprep.subr.mxu0 0.0
      %1290 = vmatpush1.msra.mxu0 0.0
      %1291 = vmatprep.subr.mxu0 0.0
      %1292 = vmatpush1.msra.mxu0 0.0
      %1293 = vmatprep.subr.mxu0 0.0
      %1294 = vmatpush1.msra.mxu0 0.0
      %1295 = vmatprep.subr.mxu0 0.0
      %1296 = vmatpush1.msra.mxu0 0.0
      %1297 = vmatprep.subr.mxu0 0.0
      %1298 = vmatpush1.msra.mxu0 0.0
      %1299 = vmatprep.subr.mxu0 0.0
      %1300 = vmatpush1.msra.mxu0 0.0
      %1301 = vmatprep.subr.mxu0 0.0
      %1302 = vmatpush1.msra.mxu0 0.0
      %1303 = vmatprep.subr.mxu0 0.0
      %1304 = vmatpush1.msra.mxu0 0.0
      %1305 = vmatprep.subr.mxu0 0.0
      %1306 = vmatpush1.msra.mxu0 0.0
      %1307 = vmatprep.subr.mxu0 0.0
      %1308 = vmatpush1.msra.mxu0 0.0
      %1309 = vmatprep.subr.mxu0 0.0
      %1310 = vmatpush1.msra.mxu0 0.0
      %1311 = vmatprep.subr.mxu0 0.0
      %1312 = vmatpush1.msra.mxu0 0.0
      %1313 = vmatprep.subr.mxu0 0.0
      %1314 = vmatpush1.msra.mxu0 0.0
      %1315 = vmatprep.subr.mxu0 0.0
      %1316 = vmatpush1.msra.mxu0 0.0
      %1317 = vmatprep.subr.mxu0 0.0
      %1318 = vmatpush1.msra.mxu0 0.0
      %1319 = vmatprep.subr.mxu0 0.0
      %1320 = vmatpush1.msra.mxu0 0.0
      %1321 = vmatprep.subr.mxu0 0.0
      %1322 = vmatpush1.msra.mxu0 0.0
      %1323 = vmatprep.subr.mxu0 0.0
      %1324 = vmatpush1.msra.mxu0 0.0
      %1325 = vmatprep.mubr.f32.mxu0 0.0
      %1326 = vmatmul.mubr.f32.gmra.mrb[0].mxu0 %v1117
      %v1327 = vpop.f32.mrb[0].mxu0
      %v1328 = vadd.f32 %v1041, %v1327
      %v1329 = vpop.f32.mrb[0].mxu0
      %v1330 = vadd.f32 %v1043, %v1329
      %1331 = vdwg.mxu0
      %1332 = vmatprep.subr.mxu0 %v601
      %1333 = vmatpush1.msra.mxu0 %v599
      %1334 = vmatprep.subr.mxu0 0.0
      %1335 = vmatpush1.msra.mxu0 0.0
      %1336 = vmatprep.subr.mxu0 0.0
      %1337 = vmatpush1.msra.mxu0 0.0
      %1338 = vmatprep.subr.mxu0 0.0
      %1339 = vmatpush1.msra.mxu0 0.0
      %1340 = vmatprep.subr.mxu0 0.0
      %1341 = vmatpush1.msra.mxu0 0.0
      %1342 = vmatprep.subr.mxu0 0.0
      %1343 = vmatpush1.msra.mxu0 0.0
      %1344 = vmatprep.subr.mxu0 0.0
      %1345 = vmatpush1.msra.mxu0 0.0
      %1346 = vmatprep.subr.mxu0 0.0
      %1347 = vmatpush1.msra.mxu0 0.0
      %1348 = vmatprep.subr.mxu0 0.0
      %1349 = vmatpush1.msra.mxu0 0.0
      %1350 = vmatprep.subr.mxu0 0.0
      %1351 = vmatpush1.msra.mxu0 0.0
      %1352 = vmatprep.subr.mxu0 0.0
      %1353 = vmatpush1.msra.mxu0 0.0
      %1354 = vmatprep.subr.mxu0 0.0
      %1355 = vmatpush1.msra.mxu0 0.0
      %1356 = vmatprep.subr.mxu0 0.0
      %1357 = vmatpush1.msra.mxu0 0.0
      %1358 = vmatprep.subr.mxu0 0.0
      %1359 = vmatpush1.msra.mxu0 0.0
      %1360 = vmatprep.subr.mxu0 0.0
      %1361 = vmatpush1.msra.mxu0 0.0
      %1362 = vmatprep.subr.mxu0 0.0
      %1363 = vmatpush1.msra.mxu0 0.0
      %1364 = vmatprep.subr.mxu0 0.0
      %1365 = vmatpush1.msra.mxu0 0.0
      %1366 = vmatprep.subr.mxu0 0.0
      %1367 = vmatpush1.msra.mxu0 0.0
      %1368 = vmatprep.subr.mxu0 0.0
      %1369 = vmatpush1.msra.mxu0 0.0
      %1370 = vmatprep.subr.mxu0 0.0
      %1371 = vmatpush1.msra.mxu0 0.0
      %1372 = vmatprep.subr.mxu0 0.0
      %1373 = vmatpush1.msra.mxu0 0.0
      %1374 = vmatprep.subr.mxu0 0.0
      %1375 = vmatpush1.msra.mxu0 0.0
      %1376 = vmatprep.subr.mxu0 0.0
      %1377 = vmatpush1.msra.mxu0 0.0
      %1378 = vmatprep.subr.mxu0 0.0
      %1379 = vmatpush1.msra.mxu0 0.0
      %1380 = vmatprep.subr.mxu0 0.0
      %1381 = vmatpush1.msra.mxu0 0.0
      %1382 = vmatprep.subr.mxu0 0.0
      %1383 = vmatpush1.msra.mxu0 0.0
      %1384 = vmatprep.subr.mxu0 0.0
      %1385 = vmatpush1.msra.mxu0 0.0
      %1386 = vmatprep.subr.mxu0 0.0
      %1387 = vmatpush1.msra.mxu0 0.0
      %1388 = vmatprep.subr.mxu0 0.0
      %1389 = vmatpush1.msra.mxu0 0.0
      %1390 = vmatprep.subr.mxu0 0.0
      %1391 = vmatpush1.msra.mxu0 0.0
      %1392 = vmatprep.subr.mxu0 0.0
      %1393 = vmatpush1.msra.mxu0 0.0
      %1394 = vmatprep.subr.mxu0 0.0
      %1395 = vmatpush1.msra.mxu0 0.0
      %1396 = vmatprep.mubr.f32.mxu0 0.0
      %1397 = vmatmul.mubr.f32.gmra.mrb[0].mxu0 %v1117
      %v1398 = vpop.f32.mrb[0].mxu0
      %v1399 = vadd.f32 %v1112, %v1398
      %v1400 = vpop.f32.mrb[0].mxu0
      %v1401 = vadd.f32 %v1114, %v1400
      %1402 = vdwg.mxu0
      %v1403 = vld [vmem:[%s372] sm:$0xff]
      %v1404 = vld [vmem:[%s372 + $0x8] sm:$0xff]
      %v1405 = vld [vmem:[%s372 + $0x10] sm:$0xff]
      %v1406 = vld [vmem:[%s372 + $0x18] sm:$0xff]
      %v1407 = vld [vmem:[%s372 + $0x20] sm:$0xff]
      %v1408 = vld [vmem:[%s372 + $0x28] sm:$0xff]
      %v1409 = vld [vmem:[%s372 + $0x30] sm:$0xff]
      %v1410 = vld [vmem:[%s372 + $0x38] sm:$0xff]
      %v1411 = vadd.f32 %v1186, %v1403
      %v1412 = vadd.f32 %v1188, %v1404
      %v1413 = vadd.f32 %v1257, %v1405
      %v1414 = vadd.f32 %v1259, %v1406
      %v1415 = vadd.f32 %v1328, %v1407
      %v1416 = vadd.f32 %v1330, %v1408
      %v1417 = vadd.f32 %v1399, %v1409
      %v1418 = vadd.f32 %v1401, %v1410
      %1419 = vst [vmem:[%s378] sm:$0xff] %v1411
      %1420 = vst [vmem:[%s378 + $0x8] sm:$0xff] %v1412
      %1421 = vst [vmem:[%s378 + $0x10] sm:$0xff] %v1413
      %1422 = vst [vmem:[%s378 + $0x18] sm:$0xff] %v1414
      %1423 = vst [vmem:[%s378 + $0x20] sm:$0xff] %v1415
      %1424 = vst [vmem:[%s378 + $0x28] sm:$0xff] %v1416
      %1425 = vst [vmem:[%s378 + $0x30] sm:$0xff] %v1417
      %1426 = vst [vmem:[%s378 + $0x38] sm:$0xff] %v1418
      %s1427 = smul.u32 8, %s20
      %p1428 = scmp.lt.s32.totalorder %s1427, 31
      %s1429 = scalar_select %p1428, %s1427, 31
      %s1430 = smul.addr %s1429, 8
      %s1431 = scalar_lea.vmem %s9, %s1430
      // Predicated region
      $region57: #{coatten_forward.3} parent=55 // pred_check
        %p1432 = pneg %p242
      $region58: #{coatten_forward.3} parent=55 // pred_check_branch
        %1434 = sbr.rel (%p1432) target = $region60
      $region59: #{coatten_forward.3} parent=55 // pred_region
        %s1435 = smul.u32 8, %s20
      $region60: #{coatten_forward.3} parent=55 // pred_fallthru
        _
    $region56: #{coatten_forward.3} parent=5 // pred_fallthru
      _
    %p1436 = scmp.le.s32.totalorder 2, %s15
    // Predicated region
    $region61: #{coatten_forward.3} parent=5 // pred_check
      %p1437 = pneg %p1436
    $region62: #{coatten_forward.3} parent=5 // pred_check_branch
      %1439 = sbr.rel (%p1437) target = $region64
    $region63: #{coatten_forward.3} parent=5 // pred_region
      %s1440 = ssub.s32 %s15, 2
      // Predicated region
      $region65: #{coatten_forward.3} parent=63 // pred_check
        %p1441 = pneg %p248
      $region66: #{coatten_forward.3} parent=63 // pred_check_branch
        %1443 = sbr.rel (%p1441) target = $region68
      $region67: #{coatten_forward.3} parent=63 // pred_region
        %s1444 = smul.u32 8, %s21
        %p1445 = scmp.lt.s32.totalorder %s1444, 31
        %s1446 = scalar_select %p1445, %s1444, 31
        %s1447 = smul.addr %s1446, 8
        %s1448 = scalar_lea.vmem %s9, %s1447
      $region68: #{coatten_forward.3} parent=63 // pred_fallthru
        _
    $region64: #{coatten_forward.3} parent=5 // pred_fallthru
      _
  $region6: #{coatten_forward.3} parent=0 // loop_footer
    %s19 = sadd.s32 1, %s15
  $region7: #{coatten_forward.3} parent=0 // loop_footer_branch
    %14 = sbr.rel target = $region3
  $region8: #{coatten_forward.3} parent=0 // loop_exit
    _

</llo_original>
